<compile_context>
chip_gen: v5e
topology: v5e:2x2
jax: 0.10.0
libtpu: 0.0.40
codegen_flags: <defaults>
</compile_context>

<pallas_src>
import math
import functools

import jax
import jax.numpy as jnp
from jax.experimental import pallas as pl
from jax.experimental.pallas import tpu as pltpu


# ----------------------------------------------------------------------------
# helpers
# ----------------------------------------------------------------------------
def _pick_tile(dim, cap, align):
    """Largest tile <= cap that divides `dim` and respects TPU alignment.

    If dim <= cap we use the full dimension (always legal).  Otherwise search
    for an `align`-multiple divisor; if none exists fall back to the full dim
    (no tiling), which is still correct.
    """
    if dim <= cap:
        return dim
    t = (cap // align) * align
    while t >= align:
        if dim % t == 0:
            return t
        t -= align
    return dim


# ----------------------------------------------------------------------------
# Kernel A: qkv projection + head split
#   x: (B, N, C), w{q,k,v}: (H, C, D)  ->  q/k/v: (B, H, N, D)
# ----------------------------------------------------------------------------
def _qkv_headsplit_kernel(x_ref, wq_ref, wk_ref, wv_ref,
                          q_ref, k_ref, v_ref,
                          acc_q, acc_k, acc_v):
    kk = pl.program_id(2)
    num_heads = q_ref.shape[0]

    @pl.when(kk == 0)
    def _():
        acc_q[...] = jnp.zeros_like(acc_q)
        acc_k[...] = jnp.zeros_like(acc_k)
        acc_v[...] = jnp.zeros_like(acc_v)

    x = x_ref[...]                                   # (tmn, tk), native dtype
    for h in range(num_heads):                       # static unroll over heads
        acc_q[h] = acc_q[h] + jnp.dot(x, wq_ref[h],
                                      preferred_element_type=jnp.float32)
        acc_k[h] = acc_k[h] + jnp.dot(x, wk_ref[h],
                                      preferred_element_type=jnp.float32)
        acc_v[h] = acc_v[h] + jnp.dot(x, wv_ref[h],
                                      preferred_element_type=jnp.float32)

    @pl.when(kk == pl.num_programs(2) - 1)
    def _():
        q_ref[...] = acc_q[...].astype(q_ref.dtype)
        k_ref[...] = acc_k[...].astype(k_ref.dtype)
        v_ref[...] = acc_v[...].astype(v_ref.dtype)


def qkv_projection(x, wq, wk, wv, *, tmn_cap=256, tk_cap=512):
    B, N, C = x.shape
    H, _, D = wq.shape
    tmn = _pick_tile(N, tmn_cap, 8)
    tk = _pick_tile(C, tk_cap, 128)
    grid = (B, N // tmn, C // tk)

    x_spec = pl.BlockSpec((None, tmn, tk), lambda b, n, kk: (b, n, kk))
    w_spec = pl.BlockSpec((H, tk, D), lambda b, n, kk: (0, kk, 0))
    o_spec = pl.BlockSpec((None, H, tmn, D), lambda b, n, kk: (b, 0, n, 0))
    out_sds = jax.ShapeDtypeStruct((B, H, N, D), x.dtype)

    return pl.pallas_call(
        _qkv_headsplit_kernel,
        out_shape=(out_sds, out_sds, out_sds),
        grid=grid,
        in_specs=[x_spec, w_spec, w_spec, w_spec],
        out_specs=(o_spec, o_spec, o_spec),
        scratch_shapes=[
            pltpu.VMEM((H, tmn, D), jnp.float32),
            pltpu.VMEM((H, tmn, D), jnp.float32),
            pltpu.VMEM((H, tmn, D), jnp.float32),
        ],
        compiler_params=pltpu.CompilerParams(
            dimension_semantics=("parallel", "parallel", "arbitrary")),
    )(x, wq, wk, wv)


# ----------------------------------------------------------------------------
# Kernel B: flash-style attention, heads batched per grid step
#   q/k/v: (B, H, N, D), mask: (B, 1, N, N)  ->  (B, H, N, D)
# ----------------------------------------------------------------------------
def _flash_attn_kernel(q_ref, k_ref, v_ref, mask_ref, o_ref,
                       m_sc, l_sc, acc_sc, *, scale):
    ki = pl.program_id(2)

    @pl.when(ki == 0)
    def _():
        m_sc[...] = jnp.full(m_sc.shape, -jnp.inf, m_sc.dtype)
        l_sc[...] = jnp.zeros_like(l_sc)
        acc_sc[...] = jnp.zeros_like(acc_sc)

    # Pre-scale q (matches torch's non-fused path `q = q * self.scale`);
    # cheaper than scaling the (H, tq, tkv) score tensor.
    q = q_ref[...] * jnp.asarray(scale, q_ref.dtype)   # (H, tq, D)
    k = k_ref[...]                                     # (H, tkv, D)
    v = v_ref[...]                                     # (H, tkv, D)

    # Batched per-head q @ k^T: contraction on the last axes, f32 accumulate.
    s = jnp.einsum('hqd,hkd->hqk', q, k,
                   preferred_element_type=jnp.float32)

    # Masking (matches torch masked_fill_(mask == 0, -1e9), broadcast over H).
    msk = mask_ref[...]                                # (tq, tkv)
    s = jnp.where(msk[None, :, :] == 0, jnp.float32(-1e9), s)

    m_prev = m_sc[...]                                 # (H, tq, 1)
    m_new = jnp.maximum(m_prev, jnp.max(s, axis=-1, keepdims=True))
    alpha = jnp.exp(m_prev - m_new)
    p = jnp.exp(s - m_new)                             # (H, tq, tkv) f32
    l_sc[...] = alpha * l_sc[...] + jnp.sum(p, axis=-1, keepdims=True)
    acc_sc[...] = alpha * acc_sc[...] + jnp.einsum(
        'hqk,hkd->hqd', p.astype(v.dtype), v,
        preferred_element_type=jnp.float32)
    m_sc[...] = m_new

    @pl.when(ki == pl.num_programs(2) - 1)
    def _():
        l = l_sc[...]
        inv_l = pl.reciprocal(l, approx=True)          # EUP slot (nearly free)
        inv_l = inv_l * (2.0 - l * inv_l)              # one Newton refinement
        o_ref[...] = (acc_sc[...] * inv_l).astype(o_ref.dtype)


def flash_attention(q, k, v, mask, scale, *, tq_cap=256, tkv_cap=512):
    B, H, N, D = q.shape
    tq = _pick_tile(N, tq_cap, 8)
    tkv = _pick_tile(N, tkv_cap, 128)
    grid = (B, N // tq, N // tkv)

    q_spec = pl.BlockSpec((None, H, tq, D), lambda b, qi, ki: (b, 0, qi, 0))
    kv_spec = pl.BlockSpec((None, H, tkv, D), lambda b, qi, ki: (b, 0, ki, 0))
    # TODO(synk): mask is assumed broadcastable as (B, 1, N, N); generate it
    # in-kernel (iota) or pass int8 if HBM traffic for the mask ever matters.
    m_spec = pl.BlockSpec((None, None, tq, tkv), lambda b, qi, ki: (b, 0, qi, ki))
    o_spec = pl.BlockSpec((None, H, tq, D), lambda b, qi, ki: (b, 0, qi, 0))

    kern = functools.partial(_flash_attn_kernel, scale=scale)
    return pl.pallas_call(
        kern,
        out_shape=jax.ShapeDtypeStruct((B, H, N, D), q.dtype),
        grid=grid,
        in_specs=[q_spec, kv_spec, kv_spec, m_spec],
        out_specs=o_spec,
        scratch_shapes=[
            pltpu.VMEM((H, tq, 1), jnp.float32),
            pltpu.VMEM((H, tq, 1), jnp.float32),
            pltpu.VMEM((H, tq, D), jnp.float32),
        ],
        compiler_params=pltpu.CompilerParams(
            dimension_semantics=("parallel", "parallel", "arbitrary")),
    )(q, k, v, mask)


# ----------------------------------------------------------------------------
# Kernel C: head merge + output projection (lane-dense (B, N, C) output)
#   o: (B, H, N, D), w: (H, D, C), b: (1, C)  ->  (B, N, C)
# ----------------------------------------------------------------------------
def _head_merge_proj_kernel(x_ref, w_ref, b_ref, o_ref):
    num_heads = x_ref.shape[0]
    acc = jnp.zeros(o_ref.shape, jnp.float32)
    for h in range(num_heads):                       # static unroll over heads
        acc = acc + jnp.dot(x_ref[h], w_ref[h],
                            preferred_element_type=jnp.float32)
    o_ref[...] = (acc + b_ref[...].astype(jnp.float32)).astype(o_ref.dtype)


def head_merge_proj(o_bhnd, w_hdc, bias, *, tmn_cap=256, tn_cap=512):
    B, H, N, D = o_bhnd.shape
    C = H * D
    tmn = _pick_tile(N, tmn_cap, 8)
    tn = _pick_tile(C, tn_cap, 128)
    grid = (B, N // tmn, C // tn)

    x_spec = pl.BlockSpec((None, H, tmn, D), lambda b, n, j: (b, 0, n, 0))
    w_spec = pl.BlockSpec((H, D, tn), lambda b, n, j: (0, 0, j))
    b_spec = pl.BlockSpec((1, tn), lambda b, n, j: (0, j))
    o_spec = pl.BlockSpec((None, tmn, tn), lambda b, n, j: (b, n, j))

    return pl.pallas_call(
        _head_merge_proj_kernel,
        out_shape=jax.ShapeDtypeStruct((B, N, C), o_bhnd.dtype),
        grid=grid,
        in_specs=[x_spec, w_spec, b_spec],
        out_specs=o_spec,
        compiler_params=pltpu.CompilerParams(
            dimension_semantics=("parallel", "parallel", "parallel")),
    )(o_bhnd, w_hdc, bias)


# ----------------------------------------------------------------------------
# Full module forward
# ----------------------------------------------------------------------------
def attention_forward(x, mask, params, num_heads):
    B, N, C = x.shape
    D = C // num_heads
    scale = D ** (-0.5)

    # Rearrange weights once (tiny, parameter-sized ops); activations are never
    # transposed outside the kernels.
    qkv_w = params["qkv_w"]                                  # (C, 3C), y = x @ W
    def to_hcd(w2d):                                         # (C, C) -> (H, C, D)
        return jnp.transpose(w2d.reshape(C, num_heads, D), (1, 0, 2))
    wq = to_hcd(qkv_w[:, :C])
    wk = to_hcd(qkv_w[:, C:2 * C])
    wv = to_hcd(qkv_w[:, 2 * C:])

    # q_norm / k_norm are nn.Identity (qk_norm=False); dropouts are identity.
    q, k, v = qkv_projection(x, wq, wk, wv)                  # (B, H, N, D) each
    o = flash_attention(q, k, v, mask, scale)                # (B, H, N, D)

    wp = params["proj_w"].reshape(num_heads, D, C)           # (H, D, C), free reshape
    out = head_merge_proj(o, wp, params["proj_b"])           # (B, N, C)
    return out


# ----------------------------------------------------------------------------
# Pure-JAX reference (mirrors the PyTorch forward exactly) for verification
# ----------------------------------------------------------------------------
def attention_reference(x, mask, params, num_heads):
    B, N, C = x.shape
    head_dim = C // num_heads
    scale = head_dim ** (-0.5)
    qkv = x @ params["qkv_w"]                                # (B, N, 3C)
    qkv = qkv.reshape(B, N, 3, num_heads, head_dim)
    qkv = jnp.transpose(qkv, (2, 0, 3, 1, 4))
    q, k, v = qkv[0], qkv[1], qkv[2]
    attn = (q * scale) @ jnp.swapaxes(k, -2, -1)             # (B, H, N, N)
    attn = jnp.where(mask == 0, -1e9, attn)
    attn = jax.nn.softmax(attn, axis=-1)
    o = attn @ v                                             # (B, H, N, D)
    o = jnp.transpose(o, (0, 2, 1, 3)).reshape(B, N, C)
    return o @ params["proj_w"] + params["proj_b"][0]


if __name__ == "__main__":
    key = jax.random.PRNGKey(0)
    B, N, C, num_heads = 2, 8, 32, 8            # head_dim = 4

    k_x, k_qkv, k_pw, k_pb = jax.random.split(key, 4)
    x = jax.random.normal(k_x, (B, N, C), dtype=jnp.float32)

    bound = 1.0 / math.sqrt(C)
    params = {
        # weights stored as (in, out) so y = x @ W + b; qkv has no bias
        "qkv_w": jax.random.uniform(k_qkv, (C, 3 * C), jnp.float32, -bound, bound),
        "proj_w": jax.random.uniform(k_pw, (C, C), jnp.float32, -bound, bound),
        "proj_b": jax.random.uniform(k_pb, (1, C), jnp.float32, -bound, bound),
    }

    # 0/1 mask broadcastable to (B, H, N, N) — causal here.
    mask = jnp.tril(jnp.ones((N, N), jnp.float32))[None, None]
    mask = jnp.broadcast_to(mask, (B, 1, N, N))

    out = attention_forward(x, mask, params, num_heads)
    out = jax.block_until_ready(out)

    ref = attention_reference(x, mask, params, num_heads)
    assert out.shape == (B, N, C)
    assert jnp.allclose(out, ref, rtol=1e-3, atol=1e-3), "mismatch vs reference"

    print("KERNEL_OK")
</pallas_src>

<mosaic_0001>
module attributes {stable_mosaic.version = 11 : i64} {
  func.func @_qkv_headsplit_kernel(%arg0: i32, %arg1: i32, %arg2: i32, %arg3: memref<1x8x32xf32, #tpu.memory_space<vmem>>, %arg4: memref<8x32x4xf32, #tpu.memory_space<vmem>>, %arg5: memref<8x32x4xf32, #tpu.memory_space<vmem>>, %arg6: memref<8x32x4xf32, #tpu.memory_space<vmem>>, %arg7: memref<1x8x8x4xf32, #tpu.memory_space<vmem>>, %arg8: memref<1x8x8x4xf32, #tpu.memory_space<vmem>>, %arg9: memref<1x8x8x4xf32, #tpu.memory_space<vmem>>, %arg10: memref<8x8x4xf32, #tpu.memory_space<vmem>>, %arg11: memref<8x8x4xf32, #tpu.memory_space<vmem>>, %arg12: memref<8x8x4xf32, #tpu.memory_space<vmem>>) attributes {dimension_semantics = [#tpu.dimension_semantics<parallel>, #tpu.dimension_semantics<parallel>, #tpu.dimension_semantics<arbitrary>], iteration_bounds = array<i64: 2, 1, 1>, scalar_prefetch = 0 : i64, scratch_operands = 3 : i64, tpu.core_type = #tpu.core_type<tc>, window_params = [{transform_indices = @transform_0, window_bounds = array<i64: 1, 8, 32>}, {transform_indices = @transform_1, window_bounds = array<i64: 8, 32, 4>}, {transform_indices = @transform_2, window_bounds = array<i64: 8, 32, 4>}, {transform_indices = @transform_3, window_bounds = array<i64: 8, 32, 4>}, {transform_indices = @transform_4, window_bounds = array<i64: 1, 8, 8, 4>}, {transform_indices = @transform_5, window_bounds = array<i64: 1, 8, 8, 4>}, {transform_indices = @transform_6, window_bounds = array<i64: 1, 8, 8, 4>}]} {
    %c0_i32 = arith.constant 0 : i32
    %0 = arith.cmpi eq, %arg2, %c0_i32 : i32
    %1 = arith.extui %0 : i1 to i32
    %c0_i32_0 = arith.constant 0 : i32
    %2 = arith.cmpi ne, %1, %c0_i32_0 : i32
    scf.if %2 {
      %cst_237 = arith.constant 0.000000e+00 : f32
      %224 = vector.broadcast %cst_237 : f32 to vector<8x8x4xf32>
      %c0_238 = arith.constant 0 : index
      %c0_239 = arith.constant 0 : index
      %c0_240 = arith.constant 0 : index
      %225 = vector.load %arg10[%c0_238, %c0_239, %c0_240] : memref<8x8x4xf32, #tpu.memory_space<vmem>>, vector<8x8x4xf32>
      tpu.vector_store %arg10[%c0_238, %c0_239, %c0_240], %224 {strides = array<i32>} : memref<8x8x4xf32, #tpu.memory_space<vmem>>, vector<8x8x4xf32>,
      %cst_241 = arith.constant 0.000000e+00 : f32
      %226 = vector.broadcast %cst_241 : f32 to vector<8x8x4xf32>
      %c0_242 = arith.constant 0 : index
      %c0_243 = arith.constant 0 : index
      %c0_244 = arith.constant 0 : index
      %227 = vector.load %arg11[%c0_242, %c0_243, %c0_244] : memref<8x8x4xf32, #tpu.memory_space<vmem>>, vector<8x8x4xf32>
      tpu.vector_store %arg11[%c0_242, %c0_243, %c0_244], %226 {strides = array<i32>} : memref<8x8x4xf32, #tpu.memory_space<vmem>>, vector<8x8x4xf32>,
      %cst_245 = arith.constant 0.000000e+00 : f32
      %228 = vector.broadcast %cst_245 : f32 to vector<8x8x4xf32>
      %c0_246 = arith.constant 0 : index
      %c0_247 = arith.constant 0 : index
      %c0_248 = arith.constant 0 : index
      %229 = vector.load %arg12[%c0_246, %c0_247, %c0_248] : memref<8x8x4xf32, #tpu.memory_space<vmem>>, vector<8x8x4xf32>
      tpu.vector_store %arg12[%c0_246, %c0_247, %c0_248], %228 {strides = array<i32>} : memref<8x8x4xf32, #tpu.memory_space<vmem>>, vector<8x8x4xf32>,
    } else {
    }
    %c0 = arith.constant 0 : index
    %c0_1 = arith.constant 0 : index
    %c0_2 = arith.constant 0 : index
    %3 = vector.load %arg3[%c0, %c0_1, %c0_2] : memref<1x8x32xf32, #tpu.memory_space<vmem>>, vector<1x8x32xf32>
    %4 = vector.shape_cast %3 : vector<1x8x32xf32> to vector<8x32xf32>
    %c0_3 = arith.constant 0 : index
    %c0_4 = arith.constant 0 : index
    %c0_5 = arith.constant 0 : index
    %5 = vector.load %arg10[%c0_3, %c0_4, %c0_5] : memref<8x8x4xf32, #tpu.memory_space<vmem>>, vector<1x8x4xf32>
    %6 = vector.shape_cast %5 : vector<1x8x4xf32> to vector<8x4xf32>
    %c0_6 = arith.constant 0 : index
    %c0_7 = arith.constant 0 : index
    %c0_8 = arith.constant 0 : index
    %7 = vector.load %arg4[%c0_6, %c0_7, %c0_8] : memref<8x32x4xf32, #tpu.memory_space<vmem>>, vector<1x32x4xf32>
    %8 = vector.shape_cast %7 : vector<1x32x4xf32> to vector<32x4xf32>
    %cst = arith.constant dense<0.000000e+00> : vector<8x4xf32>
    %9 = tpu.matmul %4, %8, %cst {dimension_numbers = #tpu.dot_dimension_numbers<[1], [0], [0], [1], [0, 0, 1, 1], [], []>} : vector<8x32xf32>, vector<32x4xf32>, vector<8x4xf32> -> vector<8x4xf32>
    %10 = arith.addf %6, %9 : vector<8x4xf32>
    %c0_9 = arith.constant 0 : index
    %c0_10 = arith.constant 0 : index
    %c0_11 = arith.constant 0 : index
    %11 = vector.load %arg10[%c0_9, %c0_10, %c0_11] : memref<8x8x4xf32, #tpu.memory_space<vmem>>, vector<1x8x4xf32>
    %12 = vector.shape_cast %11 : vector<1x8x4xf32> to vector<8x4xf32>
    %13 = vector.shape_cast %10 : vector<8x4xf32> to vector<1x8x4xf32>
    tpu.vector_store %arg10[%c0_9, %c0_10, %c0_11], %13 {strides = array<i32>} : memref<8x8x4xf32, #tpu.memory_space<vmem>>, vector<1x8x4xf32>,
    %c0_12 = arith.constant 0 : index
    %c0_13 = arith.constant 0 : index
    %c0_14 = arith.constant 0 : index
    %14 = vector.load %arg11[%c0_12, %c0_13, %c0_14] : memref<8x8x4xf32, #tpu.memory_space<vmem>>, vector<1x8x4xf32>
    %15 = vector.shape_cast %14 : vector<1x8x4xf32> to vector<8x4xf32>
    %c0_15 = arith.constant 0 : index
    %c0_16 = arith.constant 0 : index
    %c0_17 = arith.constant 0 : index
    %16 = vector.load %arg5[%c0_15, %c0_16, %c0_17] : memref<8x32x4xf32, #tpu.memory_space<vmem>>, vector<1x32x4xf32>
    %17 = vector.shape_cast %16 : vector<1x32x4xf32> to vector<32x4xf32>
    %cst_18 = arith.constant dense<0.000000e+00> : vector<8x4xf32>
    %18 = tpu.matmul %4, %17, %cst_18 {dimension_numbers = #tpu.dot_dimension_numbers<[1], [0], [0], [1], [0, 0, 1, 1], [], []>} : vector<8x32xf32>, vector<32x4xf32>, vector<8x4xf32> -> vector<8x4xf32>
    %19 = arith.addf %15, %18 : vector<8x4xf32>
    %c0_19 = arith.constant 0 : index
    %c0_20 = arith.constant 0 : index
    %c0_21 = arith.constant 0 : index
    %20 = vector.load %arg11[%c0_19, %c0_20, %c0_21] : memref<8x8x4xf32, #tpu.memory_space<vmem>>, vector<1x8x4xf32>
    %21 = vector.shape_cast %20 : vector<1x8x4xf32> to vector<8x4xf32>
    %22 = vector.shape_cast %19 : vector<8x4xf32> to vector<1x8x4xf32>
    tpu.vector_store %arg11[%c0_19, %c0_20, %c0_21], %22 {strides = array<i32>} : memref<8x8x4xf32, #tpu.memory_space<vmem>>, vector<1x8x4xf32>,
    %c0_22 = arith.constant 0 : index
    %c0_23 = arith.constant 0 : index
    %c0_24 = arith.constant 0 : index
    %23 = vector.load %arg12[%c0_22, %c0_23, %c0_24] : memref<8x8x4xf32, #tpu.memory_space<vmem>>, vector<1x8x4xf32>
    %24 = vector.shape_cast %23 : vector<1x8x4xf32> to vector<8x4xf32>
    %c0_25 = arith.constant 0 : index
    %c0_26 = arith.constant 0 : index
    %c0_27 = arith.constant 0 : index
    %25 = vector.load %arg6[%c0_25, %c0_26, %c0_27] : memref<8x32x4xf32, #tpu.memory_space<vmem>>, vector<1x32x4xf32>
    %26 = vector.shape_cast %25 : vector<1x32x4xf32> to vector<32x4xf32>
    %cst_28 = arith.constant dense<0.000000e+00> : vector<8x4xf32>
    %27 = tpu.matmul %4, %26, %cst_28 {dimension_numbers = #tpu.dot_dimension_numbers<[1], [0], [0], [1], [0, 0, 1, 1], [], []>} : vector<8x32xf32>, vector<32x4xf32>, vector<8x4xf32> -> vector<8x4xf32>
    %28 = arith.addf %24, %27 : vector<8x4xf32>
    %c0_29 = arith.constant 0 : index
    %c0_30 = arith.constant 0 : index
    %c0_31 = arith.constant 0 : index
    %29 = vector.load %arg12[%c0_29, %c0_30, %c0_31] : memref<8x8x4xf32, #tpu.memory_space<vmem>>, vector<1x8x4xf32>
    %30 = vector.shape_cast %29 : vector<1x8x4xf32> to vector<8x4xf32>
    %31 = vector.shape_cast %28 : vector<8x4xf32> to vector<1x8x4xf32>
    tpu.vector_store %arg12[%c0_29, %c0_30, %c0_31], %31 {strides = array<i32>} : memref<8x8x4xf32, #tpu.memory_space<vmem>>, vector<1x8x4xf32>,
    %c1 = arith.constant 1 : index
    %c0_32 = arith.constant 0 : index
    %c0_33 = arith.constant 0 : index
    %32 = vector.load %arg10[%c1, %c0_32, %c0_33] : memref<8x8x4xf32, #tpu.memory_space<vmem>>, vector<1x8x4xf32>
    %33 = vector.shape_cast %32 : vector<1x8x4xf32> to vector<8x4xf32>
    %c1_34 = arith.constant 1 : index
    %c0_35 = arith.constant 0 : index
    %c0_36 = arith.constant 0 : index
    %34 = vector.load %arg4[%c1_34, %c0_35, %c0_36] : memref<8x32x4xf32, #tpu.memory_space<vmem>>, vector<1x32x4xf32>
    %35 = vector.shape_cast %34 : vector<1x32x4xf32> to vector<32x4xf32>
    %cst_37 = arith.constant dense<0.000000e+00> : vector<8x4xf32>
    %36 = tpu.matmul %4, %35, %cst_37 {dimension_numbers = #tpu.dot_dimension_numbers<[1], [0], [0], [1], [0, 0, 1, 1], [], []>} : vector<8x32xf32>, vector<32x4xf32>, vector<8x4xf32> -> vector<8x4xf32>
    %37 = arith.addf %33, %36 : vector<8x4xf32>
    %c1_38 = arith.constant 1 : index
    %c0_39 = arith.constant 0 : index
    %c0_40 = arith.constant 0 : index
    %38 = vector.load %arg10[%c1_38, %c0_39, %c0_40] : memref<8x8x4xf32, #tpu.memory_space<vmem>>, vector<1x8x4xf32>
    %39 = vector.shape_cast %38 : vector<1x8x4xf32> to vector<8x4xf32>
    %40 = vector.shape_cast %37 : vector<8x4xf32> to vector<1x8x4xf32>
    tpu.vector_store %arg10[%c1_38, %c0_39, %c0_40], %40 {strides = array<i32>} : memref<8x8x4xf32, #tpu.memory_space<vmem>>, vector<1x8x4xf32>,
    %c1_41 = arith.constant 1 : index
    %c0_42 = arith.constant 0 : index
    %c0_43 = arith.constant 0 : index
    %41 = vector.load %arg11[%c1_41, %c0_42, %c0_43] : memref<8x8x4xf32, #tpu.memory_space<vmem>>, vector<1x8x4xf32>
    %42 = vector.shape_cast %41 : vector<1x8x4xf32> to vector<8x4xf32>
    %c1_44 = arith.constant 1 : index
    %c0_45 = arith.constant 0 : index
    %c0_46 = arith.constant 0 : index
    %43 = vector.load %arg5[%c1_44, %c0_45, %c0_46] : memref<8x32x4xf32, #tpu.memory_space<vmem>>, vector<1x32x4xf32>
    %44 = vector.shape_cast %43 : vector<1x32x4xf32> to vector<32x4xf32>
    %cst_47 = arith.constant dense<0.000000e+00> : vector<8x4xf32>
    %45 = tpu.matmul %4, %44, %cst_47 {dimension_numbers = #tpu.dot_dimension_numbers<[1], [0], [0], [1], [0, 0, 1, 1], [], []>} : vector<8x32xf32>, vector<32x4xf32>, vector<8x4xf32> -> vector<8x4xf32>
    %46 = arith.addf %42, %45 : vector<8x4xf32>
    %c1_48 = arith.constant 1 : index
    %c0_49 = arith.constant 0 : index
    %c0_50 = arith.constant 0 : index
    %47 = vector.load %arg11[%c1_48, %c0_49, %c0_50] : memref<8x8x4xf32, #tpu.memory_space<vmem>>, vector<1x8x4xf32>
    %48 = vector.shape_cast %47 : vector<1x8x4xf32> to vector<8x4xf32>
    %49 = vector.shape_cast %46 : vector<8x4xf32> to vector<1x8x4xf32>
    tpu.vector_store %arg11[%c1_48, %c0_49, %c0_50], %49 {strides = array<i32>} : memref<8x8x4xf32, #tpu.memory_space<vmem>>, vector<1x8x4xf32>,
    %c1_51 = arith.constant 1 : index
    %c0_52 = arith.constant 0 : index
    %c0_53 = arith.constant 0 : index
    %50 = vector.load %arg12[%c1_51, %c0_52, %c0_53] : memref<8x8x4xf32, #tpu.memory_space<vmem>>, vector<1x8x4xf32>
    %51 = vector.shape_cast %50 : vector<1x8x4xf32> to vector<8x4xf32>
    %c1_54 = arith.constant 1 : index
    %c0_55 = arith.constant 0 : index
    %c0_56 = arith.constant 0 : index
    %52 = vector.load %arg6[%c1_54, %c0_55, %c0_56] : memref<8x32x4xf32, #tpu.memory_space<vmem>>, vector<1x32x4xf32>
    %53 = vector.shape_cast %52 : vector<1x32x4xf32> to vector<32x4xf32>
    %cst_57 = arith.constant dense<0.000000e+00> : vector<8x4xf32>
    %54 = tpu.matmul %4, %53, %cst_57 {dimension_numbers = #tpu.dot_dimension_numbers<[1], [0], [0], [1], [0, 0, 1, 1], [], []>} : vector<8x32xf32>, vector<32x4xf32>, vector<8x4xf32> -> vector<8x4xf32>
    %55 = arith.addf %51, %54 : vector<8x4xf32>
    %c1_58 = arith.constant 1 : index
    %c0_59 = arith.constant 0 : index
    %c0_60 = arith.constant 0 : index
    %56 = vector.load %arg12[%c1_58, %c0_59, %c0_60] : memref<8x8x4xf32, #tpu.memory_space<vmem>>, vector<1x8x4xf32>
    %57 = vector.shape_cast %56 : vector<1x8x4xf32> to vector<8x4xf32>
    %58 = vector.shape_cast %55 : vector<8x4xf32> to vector<1x8x4xf32>
    tpu.vector_store %arg12[%c1_58, %c0_59, %c0_60], %58 {strides = array<i32>} : memref<8x8x4xf32, #tpu.memory_space<vmem>>, vector<1x8x4xf32>,
    %c2 = arith.constant 2 : index
    %c0_61 = arith.constant 0 : index
    %c0_62 = arith.constant 0 : index
    %59 = vector.load %arg10[%c2, %c0_61, %c0_62] : memref<8x8x4xf32, #tpu.memory_space<vmem>>, vector<1x8x4xf32>
    %60 = vector.shape_cast %59 : vector<1x8x4xf32> to vector<8x4xf32>
    %c2_63 = arith.constant 2 : index
    %c0_64 = arith.constant 0 : index
    %c0_65 = arith.constant 0 : index
    %61 = vector.load %arg4[%c2_63, %c0_64, %c0_65] : memref<8x32x4xf32, #tpu.memory_space<vmem>>, vector<1x32x4xf32>
    %62 = vector.shape_cast %61 : vector<1x32x4xf32> to vector<32x4xf32>
    %cst_66 = arith.constant dense<0.000000e+00> : vector<8x4xf32>
    %63 = tpu.matmul %4, %62, %cst_66 {dimension_numbers = #tpu.dot_dimension_numbers<[1], [0], [0], [1], [0, 0, 1, 1], [], []>} : vector<8x32xf32>, vector<32x4xf32>, vector<8x4xf32> -> vector<8x4xf32>
    %64 = arith.addf %60, %63 : vector<8x4xf32>
    %c2_67 = arith.constant 2 : index
    %c0_68 = arith.constant 0 : index
    %c0_69 = arith.constant 0 : index
    %65 = vector.load %arg10[%c2_67, %c0_68, %c0_69] : memref<8x8x4xf32, #tpu.memory_space<vmem>>, vector<1x8x4xf32>
    %66 = vector.shape_cast %65 : vector<1x8x4xf32> to vector<8x4xf32>
    %67 = vector.shape_cast %64 : vector<8x4xf32> to vector<1x8x4xf32>
    tpu.vector_store %arg10[%c2_67, %c0_68, %c0_69], %67 {strides = array<i32>} : memref<8x8x4xf32, #tpu.memory_space<vmem>>, vector<1x8x4xf32>,
    %c2_70 = arith.constant 2 : index
    %c0_71 = arith.constant 0 : index
    %c0_72 = arith.constant 0 : index
    %68 = vector.load %arg11[%c2_70, %c0_71, %c0_72] : memref<8x8x4xf32, #tpu.memory_space<vmem>>, vector<1x8x4xf32>
    %69 = vector.shape_cast %68 : vector<1x8x4xf32> to vector<8x4xf32>
    %c2_73 = arith.constant 2 : index
    %c0_74 = arith.constant 0 : index
    %c0_75 = arith.constant 0 : index
    %70 = vector.load %arg5[%c2_73, %c0_74, %c0_75] : memref<8x32x4xf32, #tpu.memory_space<vmem>>, vector<1x32x4xf32>
    %71 = vector.shape_cast %70 : vector<1x32x4xf32> to vector<32x4xf32>
    %cst_76 = arith.constant dense<0.000000e+00> : vector<8x4xf32>
    %72 = tpu.matmul %4, %71, %cst_76 {dimension_numbers = #tpu.dot_dimension_numbers<[1], [0], [0], [1], [0, 0, 1, 1], [], []>} : vector<8x32xf32>, vector<32x4xf32>, vector<8x4xf32> -> vector<8x4xf32>
    %73 = arith.addf %69, %72 : vector<8x4xf32>
    %c2_77 = arith.constant 2 : index
    %c0_78 = arith.constant 0 : index
    %c0_79 = arith.constant 0 : index
    %74 = vector.load %arg11[%c2_77, %c0_78, %c0_79] : memref<8x8x4xf32, #tpu.memory_space<vmem>>, vector<1x8x4xf32>
    %75 = vector.shape_cast %74 : vector<1x8x4xf32> to vector<8x4xf32>
    %76 = vector.shape_cast %73 : vector<8x4xf32> to vector<1x8x4xf32>
    tpu.vector_store %arg11[%c2_77, %c0_78, %c0_79], %76 {strides = array<i32>} : memref<8x8x4xf32, #tpu.memory_space<vmem>>, vector<1x8x4xf32>,
    %c2_80 = arith.constant 2 : index
    %c0_81 = arith.constant 0 : index
    %c0_82 = arith.constant 0 : index
    %77 = vector.load %arg12[%c2_80, %c0_81, %c0_82] : memref<8x8x4xf32, #tpu.memory_space<vmem>>, vector<1x8x4xf32>
    %78 = vector.shape_cast %77 : vector<1x8x4xf32> to vector<8x4xf32>
    %c2_83 = arith.constant 2 : index
    %c0_84 = arith.constant 0 : index
    %c0_85 = arith.constant 0 : index
    %79 = vector.load %arg6[%c2_83, %c0_84, %c0_85] : memref<8x32x4xf32, #tpu.memory_space<vmem>>, vector<1x32x4xf32>
    %80 = vector.shape_cast %79 : vector<1x32x4xf32> to vector<32x4xf32>
    %cst_86 = arith.constant dense<0.000000e+00> : vector<8x4xf32>
    %81 = tpu.matmul %4, %80, %cst_86 {dimension_numbers = #tpu.dot_dimension_numbers<[1], [0], [0], [1], [0, 0, 1, 1], [], []>} : vector<8x32xf32>, vector<32x4xf32>, vector<8x4xf32> -> vector<8x4xf32>
    %82 = arith.addf %78, %81 : vector<8x4xf32>
    %c2_87 = arith.constant 2 : index
    %c0_88 = arith.constant 0 : index
    %c0_89 = arith.constant 0 : index
    %83 = vector.load %arg12[%c2_87, %c0_88, %c0_89] : memref<8x8x4xf32, #tpu.memory_space<vmem>>, vector<1x8x4xf32>
    %84 = vector.shape_cast %83 : vector<1x8x4xf32> to vector<8x4xf32>
    %85 = vector.shape_cast %82 : vector<8x4xf32> to vector<1x8x4xf32>
    tpu.vector_store %arg12[%c2_87, %c0_88, %c0_89], %85 {strides = array<i32>} : memref<8x8x4xf32, #tpu.memory_space<vmem>>, vector<1x8x4xf32>,
    %c3 = arith.constant 3 : index
    %c0_90 = arith.constant 0 : index
    %c0_91 = arith.constant 0 : index
    %86 = vector.load %arg10[%c3, %c0_90, %c0_91] : memref<8x8x4xf32, #tpu.memory_space<vmem>>, vector<1x8x4xf32>
    %87 = vector.shape_cast %86 : vector<1x8x4xf32> to vector<8x4xf32>
    %c3_92 = arith.constant 3 : index
    %c0_93 = arith.constant 0 : index
    %c0_94 = arith.constant 0 : index
    %88 = vector.load %arg4[%c3_92, %c0_93, %c0_94] : memref<8x32x4xf32, #tpu.memory_space<vmem>>, vector<1x32x4xf32>
    %89 = vector.shape_cast %88 : vector<1x32x4xf32> to vector<32x4xf32>
    %cst_95 = arith.constant dense<0.000000e+00> : vector<8x4xf32>
    %90 = tpu.matmul %4, %89, %cst_95 {dimension_numbers = #tpu.dot_dimension_numbers<[1], [0], [0], [1], [0, 0, 1, 1], [], []>} : vector<8x32xf32>, vector<32x4xf32>, vector<8x4xf32> -> vector<8x4xf32>
    %91 = arith.addf %87, %90 : vector<8x4xf32>
    %c3_96 = arith.constant 3 : index
    %c0_97 = arith.constant 0 : index
    %c0_98 = arith.constant 0 : index
    %92 = vector.load %arg10[%c3_96, %c0_97, %c0_98] : memref<8x8x4xf32, #tpu.memory_space<vmem>>, vector<1x8x4xf32>
    %93 = vector.shape_cast %92 : vector<1x8x4xf32> to vector<8x4xf32>
    %94 = vector.shape_cast %91 : vector<8x4xf32> to vector<1x8x4xf32>
    tpu.vector_store %arg10[%c3_96, %c0_97, %c0_98], %94 {strides = array<i32>} : memref<8x8x4xf32, #tpu.memory_space<vmem>>, vector<1x8x4xf32>,
    %c3_99 = arith.constant 3 : index
    %c0_100 = arith.constant 0 : index
    %c0_101 = arith.constant 0 : index
    %95 = vector.load %arg11[%c3_99, %c0_100, %c0_101] : memref<8x8x4xf32, #tpu.memory_space<vmem>>, vector<1x8x4xf32>
    %96 = vector.shape_cast %95 : vector<1x8x4xf32> to vector<8x4xf32>
    %c3_102 = arith.constant 3 : index
    %c0_103 = arith.constant 0 : index
    %c0_104 = arith.constant 0 : index
    %97 = vector.load %arg5[%c3_102, %c0_103, %c0_104] : memref<8x32x4xf32, #tpu.memory_space<vmem>>, vector<1x32x4xf32>
    %98 = vector.shape_cast %97 : vector<1x32x4xf32> to vector<32x4xf32>
    %cst_105 = arith.constant dense<0.000000e+00> : vector<8x4xf32>
    %99 = tpu.matmul %4, %98, %cst_105 {dimension_numbers = #tpu.dot_dimension_numbers<[1], [0], [0], [1], [0, 0, 1, 1], [], []>} : vector<8x32xf32>, vector<32x4xf32>, vector<8x4xf32> -> vector<8x4xf32>
    %100 = arith.addf %96, %99 : vector<8x4xf32>
    %c3_106 = arith.constant 3 : index
    %c0_107 = arith.constant 0 : index
    %c0_108 = arith.constant 0 : index
    %101 = vector.load %arg11[%c3_106, %c0_107, %c0_108] : memref<8x8x4xf32, #tpu.memory_space<vmem>>, vector<1x8x4xf32>
    %102 = vector.shape_cast %101 : vector<1x8x4xf32> to vector<8x4xf32>
    %103 = vector.shape_cast %100 : vector<8x4xf32> to vector<1x8x4xf32>
    tpu.vector_store %arg11[%c3_106, %c0_107, %c0_108], %103 {strides = array<i32>} : memref<8x8x4xf32, #tpu.memory_space<vmem>>, vector<1x8x4xf32>,
    %c3_109 = arith.constant 3 : index
    %c0_110 = arith.constant 0 : index
    %c0_111 = arith.constant 0 : index
    %104 = vector.load %arg12[%c3_109, %c0_110, %c0_111] : memref<8x8x4xf32, #tpu.memory_space<vmem>>, vector<1x8x4xf32>
    %105 = vector.shape_cast %104 : vector<1x8x4xf32> to vector<8x4xf32>
    %c3_112 = arith.constant 3 : index
    %c0_113 = arith.constant 0 : index
    %c0_114 = arith.constant 0 : index
    %106 = vector.load %arg6[%c3_112, %c0_113, %c0_114] : memref<8x32x4xf32, #tpu.memory_space<vmem>>, vector<1x32x4xf32>
    %107 = vector.shape_cast %106 : vector<1x32x4xf32> to vector<32x4xf32>
    %cst_115 = arith.constant dense<0.000000e+00> : vector<8x4xf32>
    %108 = tpu.matmul %4, %107, %cst_115 {dimension_numbers = #tpu.dot_dimension_numbers<[1], [0], [0], [1], [0, 0, 1, 1], [], []>} : vector<8x32xf32>, vector<32x4xf32>, vector<8x4xf32> -> vector<8x4xf32>
    %109 = arith.addf %105, %108 : vector<8x4xf32>
    %c3_116 = arith.constant 3 : index
    %c0_117 = arith.constant 0 : index
    %c0_118 = arith.constant 0 : index
    %110 = vector.load %arg12[%c3_116, %c0_117, %c0_118] : memref<8x8x4xf32, #tpu.memory_space<vmem>>, vector<1x8x4xf32>
    %111 = vector.shape_cast %110 : vector<1x8x4xf32> to vector<8x4xf32>
    %112 = vector.shape_cast %109 : vector<8x4xf32> to vector<1x8x4xf32>
    tpu.vector_store %arg12[%c3_116, %c0_117, %c0_118], %112 {strides = array<i32>} : memref<8x8x4xf32, #tpu.memory_space<vmem>>, vector<1x8x4xf32>,
    %c4 = arith.constant 4 : index
    %c0_119 = arith.constant 0 : index
    %c0_120 = arith.constant 0 : index
    %113 = vector.load %arg10[%c4, %c0_119, %c0_120] : memref<8x8x4xf32, #tpu.memory_space<vmem>>, vector<1x8x4xf32>
    %114 = vector.shape_cast %113 : vector<1x8x4xf32> to vector<8x4xf32>
    %c4_121 = arith.constant 4 : index
    %c0_122 = arith.constant 0 : index
    %c0_123 = arith.constant 0 : index
    %115 = vector.load %arg4[%c4_121, %c0_122, %c0_123] : memref<8x32x4xf32, #tpu.memory_space<vmem>>, vector<1x32x4xf32>
    %116 = vector.shape_cast %115 : vector<1x32x4xf32> to vector<32x4xf32>
    %cst_124 = arith.constant dense<0.000000e+00> : vector<8x4xf32>
    %117 = tpu.matmul %4, %116, %cst_124 {dimension_numbers = #tpu.dot_dimension_numbers<[1], [0], [0], [1], [0, 0, 1, 1], [], []>} : vector<8x32xf32>, vector<32x4xf32>, vector<8x4xf32> -> vector<8x4xf32>
    %118 = arith.addf %114, %117 : vector<8x4xf32>
    %c4_125 = arith.constant 4 : index
    %c0_126 = arith.constant 0 : index
    %c0_127 = arith.constant 0 : index
    %119 = vector.load %arg10[%c4_125, %c0_126, %c0_127] : memref<8x8x4xf32, #tpu.memory_space<vmem>>, vector<1x8x4xf32>
    %120 = vector.shape_cast %119 : vector<1x8x4xf32> to vector<8x4xf32>
    %121 = vector.shape_cast %118 : vector<8x4xf32> to vector<1x8x4xf32>
    tpu.vector_store %arg10[%c4_125, %c0_126, %c0_127], %121 {strides = array<i32>} : memref<8x8x4xf32, #tpu.memory_space<vmem>>, vector<1x8x4xf32>,
    %c4_128 = arith.constant 4 : index
    %c0_129 = arith.constant 0 : index
    %c0_130 = arith.constant 0 : index
    %122 = vector.load %arg11[%c4_128, %c0_129, %c0_130] : memref<8x8x4xf32, #tpu.memory_space<vmem>>, vector<1x8x4xf32>
    %123 = vector.shape_cast %122 : vector<1x8x4xf32> to vector<8x4xf32>
    %c4_131 = arith.constant 4 : index
    %c0_132 = arith.constant 0 : index
    %c0_133 = arith.constant 0 : index
    %124 = vector.load %arg5[%c4_131, %c0_132, %c0_133] : memref<8x32x4xf32, #tpu.memory_space<vmem>>, vector<1x32x4xf32>
    %125 = vector.shape_cast %124 : vector<1x32x4xf32> to vector<32x4xf32>
    %cst_134 = arith.constant dense<0.000000e+00> : vector<8x4xf32>
    %126 = tpu.matmul %4, %125, %cst_134 {dimension_numbers = #tpu.dot_dimension_numbers<[1], [0], [0], [1], [0, 0, 1, 1], [], []>} : vector<8x32xf32>, vector<32x4xf32>, vector<8x4xf32> -> vector<8x4xf32>
    %127 = arith.addf %123, %126 : vector<8x4xf32>
    %c4_135 = arith.constant 4 : index
    %c0_136 = arith.constant 0 : index
    %c0_137 = arith.constant 0 : index
    %128 = vector.load %arg11[%c4_135, %c0_136, %c0_137] : memref<8x8x4xf32, #tpu.memory_space<vmem>>, vector<1x8x4xf32>
    %129 = vector.shape_cast %128 : vector<1x8x4xf32> to vector<8x4xf32>
    %130 = vector.shape_cast %127 : vector<8x4xf32> to vector<1x8x4xf32>
    tpu.vector_store %arg11[%c4_135, %c0_136, %c0_137], %130 {strides = array<i32>} : memref<8x8x4xf32, #tpu.memory_space<vmem>>, vector<1x8x4xf32>,
    %c4_138 = arith.constant 4 : index
    %c0_139 = arith.constant 0 : index
    %c0_140 = arith.constant 0 : index
    %131 = vector.load %arg12[%c4_138, %c0_139, %c0_140] : memref<8x8x4xf32, #tpu.memory_space<vmem>>, vector<1x8x4xf32>
    %132 = vector.shape_cast %131 : vector<1x8x4xf32> to vector<8x4xf32>
    %c4_141 = arith.constant 4 : index
    %c0_142 = arith.constant 0 : index
    %c0_143 = arith.constant 0 : index
    %133 = vector.load %arg6[%c4_141, %c0_142, %c0_143] : memref<8x32x4xf32, #tpu.memory_space<vmem>>, vector<1x32x4xf32>
    %134 = vector.shape_cast %133 : vector<1x32x4xf32> to vector<32x4xf32>
    %cst_144 = arith.constant dense<0.000000e+00> : vector<8x4xf32>
    %135 = tpu.matmul %4, %134, %cst_144 {dimension_numbers = #tpu.dot_dimension_numbers<[1], [0], [0], [1], [0, 0, 1, 1], [], []>} : vector<8x32xf32>, vector<32x4xf32>, vector<8x4xf32> -> vector<8x4xf32>
    %136 = arith.addf %132, %135 : vector<8x4xf32>
    %c4_145 = arith.constant 4 : index
    %c0_146 = arith.constant 0 : index
    %c0_147 = arith.constant 0 : index
    %137 = vector.load %arg12[%c4_145, %c0_146, %c0_147] : memref<8x8x4xf32, #tpu.memory_space<vmem>>, vector<1x8x4xf32>
    %138 = vector.shape_cast %137 : vector<1x8x4xf32> to vector<8x4xf32>
    %139 = vector.shape_cast %136 : vector<8x4xf32> to vector<1x8x4xf32>
    tpu.vector_store %arg12[%c4_145, %c0_146, %c0_147], %139 {strides = array<i32>} : memref<8x8x4xf32, #tpu.memory_space<vmem>>, vector<1x8x4xf32>,
    %c5 = arith.constant 5 : index
    %c0_148 = arith.constant 0 : index
    %c0_149 = arith.constant 0 : index
    %140 = vector.load %arg10[%c5, %c0_148, %c0_149] : memref<8x8x4xf32, #tpu.memory_space<vmem>>, vector<1x8x4xf32>
    %141 = vector.shape_cast %140 : vector<1x8x4xf32> to vector<8x4xf32>
    %c5_150 = arith.constant 5 : index
    %c0_151 = arith.constant 0 : index
    %c0_152 = arith.constant 0 : index
    %142 = vector.load %arg4[%c5_150, %c0_151, %c0_152] : memref<8x32x4xf32, #tpu.memory_space<vmem>>, vector<1x32x4xf32>
    %143 = vector.shape_cast %142 : vector<1x32x4xf32> to vector<32x4xf32>
    %cst_153 = arith.constant dense<0.000000e+00> : vector<8x4xf32>
    %144 = tpu.matmul %4, %143, %cst_153 {dimension_numbers = #tpu.dot_dimension_numbers<[1], [0], [0], [1], [0, 0, 1, 1], [], []>} : vector<8x32xf32>, vector<32x4xf32>, vector<8x4xf32> -> vector<8x4xf32>
    %145 = arith.addf %141, %144 : vector<8x4xf32>
    %c5_154 = arith.constant 5 : index
    %c0_155 = arith.constant 0 : index
    %c0_156 = arith.constant 0 : index
    %146 = vector.load %arg10[%c5_154, %c0_155, %c0_156] : memref<8x8x4xf32, #tpu.memory_space<vmem>>, vector<1x8x4xf32>
    %147 = vector.shape_cast %146 : vector<1x8x4xf32> to vector<8x4xf32>
    %148 = vector.shape_cast %145 : vector<8x4xf32> to vector<1x8x4xf32>
    tpu.vector_store %arg10[%c5_154, %c0_155, %c0_156], %148 {strides = array<i32>} : memref<8x8x4xf32, #tpu.memory_space<vmem>>, vector<1x8x4xf32>,
    %c5_157 = arith.constant 5 : index
    %c0_158 = arith.constant 0 : index
    %c0_159 = arith.constant 0 : index
    %149 = vector.load %arg11[%c5_157, %c0_158, %c0_159] : memref<8x8x4xf32, #tpu.memory_space<vmem>>, vector<1x8x4xf32>
    %150 = vector.shape_cast %149 : vector<1x8x4xf32> to vector<8x4xf32>
    %c5_160 = arith.constant 5 : index
    %c0_161 = arith.constant 0 : index
    %c0_162 = arith.constant 0 : index
    %151 = vector.load %arg5[%c5_160, %c0_161, %c0_162] : memref<8x32x4xf32, #tpu.memory_space<vmem>>, vector<1x32x4xf32>
    %152 = vector.shape_cast %151 : vector<1x32x4xf32> to vector<32x4xf32>
    %cst_163 = arith.constant dense<0.000000e+00> : vector<8x4xf32>
    %153 = tpu.matmul %4, %152, %cst_163 {dimension_numbers = #tpu.dot_dimension_numbers<[1], [0], [0], [1], [0, 0, 1, 1], [], []>} : vector<8x32xf32>, vector<32x4xf32>, vector<8x4xf32> -> vector<8x4xf32>
    %154 = arith.addf %150, %153 : vector<8x4xf32>
    %c5_164 = arith.constant 5 : index
    %c0_165 = arith.constant 0 : index
    %c0_166 = arith.constant 0 : index
    %155 = vector.load %arg11[%c5_164, %c0_165, %c0_166] : memref<8x8x4xf32, #tpu.memory_space<vmem>>, vector<1x8x4xf32>
    %156 = vector.shape_cast %155 : vector<1x8x4xf32> to vector<8x4xf32>
    %157 = vector.shape_cast %154 : vector<8x4xf32> to vector<1x8x4xf32>
    tpu.vector_store %arg11[%c5_164, %c0_165, %c0_166], %157 {strides = array<i32>} : memref<8x8x4xf32, #tpu.memory_space<vmem>>, vector<1x8x4xf32>,
    %c5_167 = arith.constant 5 : index
    %c0_168 = arith.constant 0 : index
    %c0_169 = arith.constant 0 : index
    %158 = vector.load %arg12[%c5_167, %c0_168, %c0_169] : memref<8x8x4xf32, #tpu.memory_space<vmem>>, vector<1x8x4xf32>
    %159 = vector.shape_cast %158 : vector<1x8x4xf32> to vector<8x4xf32>
    %c5_170 = arith.constant 5 : index
    %c0_171 = arith.constant 0 : index
    %c0_172 = arith.constant 0 : index
    %160 = vector.load %arg6[%c5_170, %c0_171, %c0_172] : memref<8x32x4xf32, #tpu.memory_space<vmem>>, vector<1x32x4xf32>
    %161 = vector.shape_cast %160 : vector<1x32x4xf32> to vector<32x4xf32>
    %cst_173 = arith.constant dense<0.000000e+00> : vector<8x4xf32>
    %162 = tpu.matmul %4, %161, %cst_173 {dimension_numbers = #tpu.dot_dimension_numbers<[1], [0], [0], [1], [0, 0, 1, 1], [], []>} : vector<8x32xf32>, vector<32x4xf32>, vector<8x4xf32> -> vector<8x4xf32>
    %163 = arith.addf %159, %162 : vector<8x4xf32>
    %c5_174 = arith.constant 5 : index
    %c0_175 = arith.constant 0 : index
    %c0_176 = arith.constant 0 : index
    %164 = vector.load %arg12[%c5_174, %c0_175, %c0_176] : memref<8x8x4xf32, #tpu.memory_space<vmem>>, vector<1x8x4xf32>
    %165 = vector.shape_cast %164 : vector<1x8x4xf32> to vector<8x4xf32>
    %166 = vector.shape_cast %163 : vector<8x4xf32> to vector<1x8x4xf32>
    tpu.vector_store %arg12[%c5_174, %c0_175, %c0_176], %166 {strides = array<i32>} : memref<8x8x4xf32, #tpu.memory_space<vmem>>, vector<1x8x4xf32>,
    %c6 = arith.constant 6 : index
    %c0_177 = arith.constant 0 : index
    %c0_178 = arith.constant 0 : index
    %167 = vector.load %arg10[%c6, %c0_177, %c0_178] : memref<8x8x4xf32, #tpu.memory_space<vmem>>, vector<1x8x4xf32>
    %168 = vector.shape_cast %167 : vector<1x8x4xf32> to vector<8x4xf32>
    %c6_179 = arith.constant 6 : index
    %c0_180 = arith.constant 0 : index
    %c0_181 = arith.constant 0 : index
    %169 = vector.load %arg4[%c6_179, %c0_180, %c0_181] : memref<8x32x4xf32, #tpu.memory_space<vmem>>, vector<1x32x4xf32>
    %170 = vector.shape_cast %169 : vector<1x32x4xf32> to vector<32x4xf32>
    %cst_182 = arith.constant dense<0.000000e+00> : vector<8x4xf32>
    %171 = tpu.matmul %4, %170, %cst_182 {dimension_numbers = #tpu.dot_dimension_numbers<[1], [0], [0], [1], [0, 0, 1, 1], [], []>} : vector<8x32xf32>, vector<32x4xf32>, vector<8x4xf32> -> vector<8x4xf32>
    %172 = arith.addf %168, %171 : vector<8x4xf32>
    %c6_183 = arith.constant 6 : index
    %c0_184 = arith.constant 0 : index
    %c0_185 = arith.constant 0 : index
    %173 = vector.load %arg10[%c6_183, %c0_184, %c0_185] : memref<8x8x4xf32, #tpu.memory_space<vmem>>, vector<1x8x4xf32>
    %174 = vector.shape_cast %173 : vector<1x8x4xf32> to vector<8x4xf32>
    %175 = vector.shape_cast %172 : vector<8x4xf32> to vector<1x8x4xf32>
    tpu.vector_store %arg10[%c6_183, %c0_184, %c0_185], %175 {strides = array<i32>} : memref<8x8x4xf32, #tpu.memory_space<vmem>>, vector<1x8x4xf32>,
    %c6_186 = arith.constant 6 : index
    %c0_187 = arith.constant 0 : index
    %c0_188 = arith.constant 0 : index
    %176 = vector.load %arg11[%c6_186, %c0_187, %c0_188] : memref<8x8x4xf32, #tpu.memory_space<vmem>>, vector<1x8x4xf32>
    %177 = vector.shape_cast %176 : vector<1x8x4xf32> to vector<8x4xf32>
    %c6_189 = arith.constant 6 : index
    %c0_190 = arith.constant 0 : index
    %c0_191 = arith.constant 0 : index
    %178 = vector.load %arg5[%c6_189, %c0_190, %c0_191] : memref<8x32x4xf32, #tpu.memory_space<vmem>>, vector<1x32x4xf32>
    %179 = vector.shape_cast %178 : vector<1x32x4xf32> to vector<32x4xf32>
    %cst_192 = arith.constant dense<0.000000e+00> : vector<8x4xf32>
    %180 = tpu.matmul %4, %179, %cst_192 {dimension_numbers = #tpu.dot_dimension_numbers<[1], [0], [0], [1], [0, 0, 1, 1], [], []>} : vector<8x32xf32>, vector<32x4xf32>, vector<8x4xf32> -> vector<8x4xf32>
    %181 = arith.addf %177, %180 : vector<8x4xf32>
    %c6_193 = arith.constant 6 : index
    %c0_194 = arith.constant 0 : index
    %c0_195 = arith.constant 0 : index
    %182 = vector.load %arg11[%c6_193, %c0_194, %c0_195] : memref<8x8x4xf32, #tpu.memory_space<vmem>>, vector<1x8x4xf32>
    %183 = vector.shape_cast %182 : vector<1x8x4xf32> to vector<8x4xf32>
    %184 = vector.shape_cast %181 : vector<8x4xf32> to vector<1x8x4xf32>
    tpu.vector_store %arg11[%c6_193, %c0_194, %c0_195], %184 {strides = array<i32>} : memref<8x8x4xf32, #tpu.memory_space<vmem>>, vector<1x8x4xf32>,
    %c6_196 = arith.constant 6 : index
    %c0_197 = arith.constant 0 : index
    %c0_198 = arith.constant 0 : index
    %185 = vector.load %arg12[%c6_196, %c0_197, %c0_198] : memref<8x8x4xf32, #tpu.memory_space<vmem>>, vector<1x8x4xf32>
    %186 = vector.shape_cast %185 : vector<1x8x4xf32> to vector<8x4xf32>
    %c6_199 = arith.constant 6 : index
    %c0_200 = arith.constant 0 : index
    %c0_201 = arith.constant 0 : index
    %187 = vector.load %arg6[%c6_199, %c0_200, %c0_201] : memref<8x32x4xf32, #tpu.memory_space<vmem>>, vector<1x32x4xf32>
    %188 = vector.shape_cast %187 : vector<1x32x4xf32> to vector<32x4xf32>
    %cst_202 = arith.constant dense<0.000000e+00> : vector<8x4xf32>
    %189 = tpu.matmul %4, %188, %cst_202 {dimension_numbers = #tpu.dot_dimension_numbers<[1], [0], [0], [1], [0, 0, 1, 1], [], []>} : vector<8x32xf32>, vector<32x4xf32>, vector<8x4xf32> -> vector<8x4xf32>
    %190 = arith.addf %186, %189 : vector<8x4xf32>
    %c6_203 = arith.constant 6 : index
    %c0_204 = arith.constant 0 : index
    %c0_205 = arith.constant 0 : index
    %191 = vector.load %arg12[%c6_203, %c0_204, %c0_205] : memref<8x8x4xf32, #tpu.memory_space<vmem>>, vector<1x8x4xf32>
    %192 = vector.shape_cast %191 : vector<1x8x4xf32> to vector<8x4xf32>
    %193 = vector.shape_cast %190 : vector<8x4xf32> to vector<1x8x4xf32>
    tpu.vector_store %arg12[%c6_203, %c0_204, %c0_205], %193 {strides = array<i32>} : memref<8x8x4xf32, #tpu.memory_space<vmem>>, vector<1x8x4xf32>,
    %c7 = arith.constant 7 : index
    %c0_206 = arith.constant 0 : index
    %c0_207 = arith.constant 0 : index
    %194 = vector.load %arg10[%c7, %c0_206, %c0_207] : memref<8x8x4xf32, #tpu.memory_space<vmem>>, vector<1x8x4xf32>
    %195 = vector.shape_cast %194 : vector<1x8x4xf32> to vector<8x4xf32>
    %c7_208 = arith.constant 7 : index
    %c0_209 = arith.constant 0 : index
    %c0_210 = arith.constant 0 : index
    %196 = vector.load %arg4[%c7_208, %c0_209, %c0_210] : memref<8x32x4xf32, #tpu.memory_space<vmem>>, vector<1x32x4xf32>
    %197 = vector.shape_cast %196 : vector<1x32x4xf32> to vector<32x4xf32>
    %cst_211 = arith.constant dense<0.000000e+00> : vector<8x4xf32>
    %198 = tpu.matmul %4, %197, %cst_211 {dimension_numbers = #tpu.dot_dimension_numbers<[1], [0], [0], [1], [0, 0, 1, 1], [], []>} : vector<8x32xf32>, vector<32x4xf32>, vector<8x4xf32> -> vector<8x4xf32>
    %199 = arith.addf %195, %198 : vector<8x4xf32>
    %c7_212 = arith.constant 7 : index
    %c0_213 = arith.constant 0 : index
    %c0_214 = arith.constant 0 : index
    %200 = vector.load %arg10[%c7_212, %c0_213, %c0_214] : memref<8x8x4xf32, #tpu.memory_space<vmem>>, vector<1x8x4xf32>
    %201 = vector.shape_cast %200 : vector<1x8x4xf32> to vector<8x4xf32>
    %202 = vector.shape_cast %199 : vector<8x4xf32> to vector<1x8x4xf32>
    tpu.vector_store %arg10[%c7_212, %c0_213, %c0_214], %202 {strides = array<i32>} : memref<8x8x4xf32, #tpu.memory_space<vmem>>, vector<1x8x4xf32>,
    %c7_215 = arith.constant 7 : index
    %c0_216 = arith.constant 0 : index
    %c0_217 = arith.constant 0 : index
    %203 = vector.load %arg11[%c7_215, %c0_216, %c0_217] : memref<8x8x4xf32, #tpu.memory_space<vmem>>, vector<1x8x4xf32>
    %204 = vector.shape_cast %203 : vector<1x8x4xf32> to vector<8x4xf32>
    %c7_218 = arith.constant 7 : index
    %c0_219 = arith.constant 0 : index
    %c0_220 = arith.constant 0 : index
    %205 = vector.load %arg5[%c7_218, %c0_219, %c0_220] : memref<8x32x4xf32, #tpu.memory_space<vmem>>, vector<1x32x4xf32>
    %206 = vector.shape_cast %205 : vector<1x32x4xf32> to vector<32x4xf32>
    %cst_221 = arith.constant dense<0.000000e+00> : vector<8x4xf32>
    %207 = tpu.matmul %4, %206, %cst_221 {dimension_numbers = #tpu.dot_dimension_numbers<[1], [0], [0], [1], [0, 0, 1, 1], [], []>} : vector<8x32xf32>, vector<32x4xf32>, vector<8x4xf32> -> vector<8x4xf32>
    %208 = arith.addf %204, %207 : vector<8x4xf32>
    %c7_222 = arith.constant 7 : index
    %c0_223 = arith.constant 0 : index
    %c0_224 = arith.constant 0 : index
    %209 = vector.load %arg11[%c7_222, %c0_223, %c0_224] : memref<8x8x4xf32, #tpu.memory_space<vmem>>, vector<1x8x4xf32>
    %210 = vector.shape_cast %209 : vector<1x8x4xf32> to vector<8x4xf32>
    %211 = vector.shape_cast %208 : vector<8x4xf32> to vector<1x8x4xf32>
    tpu.vector_store %arg11[%c7_222, %c0_223, %c0_224], %211 {strides = array<i32>} : memref<8x8x4xf32, #tpu.memory_space<vmem>>, vector<1x8x4xf32>,
    %c7_225 = arith.constant 7 : index
    %c0_226 = arith.constant 0 : index
    %c0_227 = arith.constant 0 : index
    %212 = vector.load %arg12[%c7_225, %c0_226, %c0_227] : memref<8x8x4xf32, #tpu.memory_space<vmem>>, vector<1x8x4xf32>
    %213 = vector.shape_cast %212 : vector<1x8x4xf32> to vector<8x4xf32>
    %c7_228 = arith.constant 7 : index
    %c0_229 = arith.constant 0 : index
    %c0_230 = arith.constant 0 : index
    %214 = vector.load %arg6[%c7_228, %c0_229, %c0_230] : memref<8x32x4xf32, #tpu.memory_space<vmem>>, vector<1x32x4xf32>
    %215 = vector.shape_cast %214 : vector<1x32x4xf32> to vector<32x4xf32>
    %cst_231 = arith.constant dense<0.000000e+00> : vector<8x4xf32>
    %216 = tpu.matmul %4, %215, %cst_231 {dimension_numbers = #tpu.dot_dimension_numbers<[1], [0], [0], [1], [0, 0, 1, 1], [], []>} : vector<8x32xf32>, vector<32x4xf32>, vector<8x4xf32> -> vector<8x4xf32>
    %217 = arith.addf %213, %216 : vector<8x4xf32>
    %c7_232 = arith.constant 7 : index
    %c0_233 = arith.constant 0 : index
    %c0_234 = arith.constant 0 : index
    %218 = vector.load %arg12[%c7_232, %c0_233, %c0_234] : memref<8x8x4xf32, #tpu.memory_space<vmem>>, vector<1x8x4xf32>
    %219 = vector.shape_cast %218 : vector<1x8x4xf32> to vector<8x4xf32>
    %220 = vector.shape_cast %217 : vector<8x4xf32> to vector<1x8x4xf32>
    tpu.vector_store %arg12[%c7_232, %c0_233, %c0_234], %220 {strides = array<i32>} : memref<8x8x4xf32, #tpu.memory_space<vmem>>, vector<1x8x4xf32>,
    %c0_i32_235 = arith.constant 0 : i32
    %221 = arith.cmpi eq, %arg2, %c0_i32_235 : i32
    %222 = arith.extui %221 : i1 to i32
    %c0_i32_236 = arith.constant 0 : i32
    %223 = arith.cmpi ne, %222, %c0_i32_236 : i32
    scf.if %223 {
      %c0_237 = arith.constant 0 : index
      %c0_238 = arith.constant 0 : index
      %c0_239 = arith.constant 0 : index
      %224 = vector.load %arg10[%c0_237, %c0_238, %c0_239] : memref<8x8x4xf32, #tpu.memory_space<vmem>>, vector<8x8x4xf32>
      %c0_240 = arith.constant 0 : index
      %c0_241 = arith.constant 0 : index
      %c0_242 = arith.constant 0 : index
      %c0_243 = arith.constant 0 : index
      %225 = vector.load %arg7[%c0_240, %c0_241, %c0_242, %c0_243] : memref<1x8x8x4xf32, #tpu.memory_space<vmem>>, vector<1x8x8x4xf32>
      %226 = vector.shape_cast %225 : vector<1x8x8x4xf32> to vector<8x8x4xf32>
      %227 = vector.shape_cast %224 : vector<8x8x4xf32> to vector<1x8x8x4xf32>
      tpu.vector_store %arg7[%c0_240, %c0_241, %c0_242, %c0_243], %227 {strides = array<i32>} : memref<1x8x8x4xf32, #tpu.memory_space<vmem>>, vector<1x8x8x4xf32>,
      %c0_244 = arith.constant 0 : index
      %c0_245 = arith.constant 0 : index
      %c0_246 = arith.constant 0 : index
      %228 = vector.load %arg11[%c0_244, %c0_245, %c0_246] : memref<8x8x4xf32, #tpu.memory_space<vmem>>, vector<8x8x4xf32>
      %c0_247 = arith.constant 0 : index
      %c0_248 = arith.constant 0 : index
      %c0_249 = arith.constant 0 : index
      %c0_250 = arith.constant 0 : index
      %229 = vector.load %arg8[%c0_247, %c0_248, %c0_249, %c0_250] : memref<1x8x8x4xf32, #tpu.memory_space<vmem>>, vector<1x8x8x4xf32>
      %230 = vector.shape_cast %229 : vector<1x8x8x4xf32> to vector<8x8x4xf32>
      %231 = vector.shape_cast %228 : vector<8x8x4xf32> to vector<1x8x8x4xf32>
      tpu.vector_store %arg8[%c0_247, %c0_248, %c0_249, %c0_250], %231 {strides = array<i32>} : memref<1x8x8x4xf32, #tpu.memory_space<vmem>>, vector<1x8x8x4xf32>,
      %c0_251 = arith.constant 0 : index
      %c0_252 = arith.constant 0 : index
      %c0_253 = arith.constant 0 : index
      %232 = vector.load %arg12[%c0_251, %c0_252, %c0_253] : memref<8x8x4xf32, #tpu.memory_space<vmem>>, vector<8x8x4xf32>
      %c0_254 = arith.constant 0 : index
      %c0_255 = arith.constant 0 : index
      %c0_256 = arith.constant 0 : index
      %c0_257 = arith.constant 0 : index
      %233 = vector.load %arg9[%c0_254, %c0_255, %c0_256, %c0_257] : memref<1x8x8x4xf32, #tpu.memory_space<vmem>>, vector<1x8x8x4xf32>
      %234 = vector.shape_cast %233 : vector<1x8x8x4xf32> to vector<8x8x4xf32>
      %235 = vector.shape_cast %232 : vector<8x8x4xf32> to vector<1x8x8x4xf32>
      tpu.vector_store %arg9[%c0_254, %c0_255, %c0_256, %c0_257], %235 {strides = array<i32>} : memref<1x8x8x4xf32, #tpu.memory_space<vmem>>, vector<1x8x8x4xf32>,
    } else {
    }
    return
  }
  func.func @transform_0(%arg0: i32, %arg1: i32, %arg2: i32) -> (i32, i32, i32) {
    %c0_i32 = arith.constant 0 : i32
    return %arg0, %arg1, %arg2 : i32, i32, i32
  }
  func.func @transform_1(%arg0: i32, %arg1: i32, %arg2: i32) -> (i32, i32, i32) {
    %c0_i32 = arith.constant 0 : i32
    %c0_i32_0 = arith.constant 0 : i32
    %c0_i32_1 = arith.constant 0 : i32
    return %c0_i32, %arg2, %c0_i32_0 : i32, i32, i32
  }
  func.func @transform_2(%arg0: i32, %arg1: i32, %arg2: i32) -> (i32, i32, i32) {
    %c0_i32 = arith.constant 0 : i32
    %c0_i32_0 = arith.constant 0 : i32
    %c0_i32_1 = arith.constant 0 : i32
    return %c0_i32, %arg2, %c0_i32_0 : i32, i32, i32
  }
  func.func @transform_3(%arg0: i32, %arg1: i32, %arg2: i32) -> (i32, i32, i32) {
    %c0_i32 = arith.constant 0 : i32
    %c0_i32_0 = arith.constant 0 : i32
    %c0_i32_1 = arith.constant 0 : i32
    return %c0_i32, %arg2, %c0_i32_0 : i32, i32, i32
  }
  func.func @transform_4(%arg0: i32, %arg1: i32, %arg2: i32) -> (i32, i32, i32, i32) {
    %c0_i32 = arith.constant 0 : i32
    %c0_i32_0 = arith.constant 0 : i32
    %c0_i32_1 = arith.constant 0 : i32
    return %arg0, %c0_i32, %arg1, %c0_i32_0 : i32, i32, i32, i32
  }
  func.func @transform_5(%arg0: i32, %arg1: i32, %arg2: i32) -> (i32, i32, i32, i32) {
    %c0_i32 = arith.constant 0 : i32
    %c0_i32_0 = arith.constant 0 : i32
    %c0_i32_1 = arith.constant 0 : i32
    return %arg0, %c0_i32, %arg1, %c0_i32_0 : i32, i32, i32, i32
  }
  func.func @transform_6(%arg0: i32, %arg1: i32, %arg2: i32) -> (i32, i32, i32, i32) {
    %c0_i32 = arith.constant 0 : i32
    %c0_i32_0 = arith.constant 0 : i32
    %c0_i32_1 = arith.constant 0 : i32
    return %arg0, %c0_i32, %arg1, %c0_i32_0 : i32, i32, i32, i32
  }
}

</mosaic_0001>

<llo_original>
// kernel: tpu_custom_call.1
$region0: #{tpu_custom_call.1}
  #allocation0 [shape = 'u32[]', space=smem, size = 0x4, offset = 0x4, fixed_abs, tag = 'smem constant byte address 0x4 - core index']
  #allocation1 [shape = 'u32[72,128]{1,0:T(1,128)}', space=vmem, size = 0x9000, scoped, tag = 'internal scratch']
  #allocation2 [shape = 'f32[8,8,4]{2,1,0:T(8,128)}', space=vmem, size = 0x8000, scoped, tag = 'scratch operand']
  #allocation3 [shape = 'f32[8,8,4]{2,1,0:T(8,128)}', space=vmem, size = 0x8000, scoped, tag = 'scratch operand']
  #allocation4 [shape = 'f32[8,8,4]{2,1,0:T(8,128)}', space=vmem, size = 0x8000, scoped, tag = 'scratch operand']
  %s0 = inlined_call_operand.vmem [shape: f32[2,8,32], index: 0, kind: input, shape index: {}]
  %s1 = inlined_call_operand.vmem [shape: f32[8,32,4], index: 1, kind: input, shape index: {}]
  %s2 = inlined_call_operand.vmem [shape: f32[8,32,4], index: 2, kind: input, shape index: {}]
  %s3 = inlined_call_operand.vmem [shape: f32[8,32,4], index: 3, kind: input, shape index: {}]
  %s4 = inlined_call_operand.vmem [shape: f32[2,8,8,4], index: 4, kind: output, shape index: {0}]
  %s5 = inlined_call_operand.vmem [shape: f32[2,8,8,4], index: 5, kind: output, shape index: {1}]
  %s6 = inlined_call_operand.vmem [shape: f32[2,8,8,4], index: 6, kind: output, shape index: {2}]
  %7 = xla_tuple %s4, %s5, %s6
  %s8 = sld [smem:[#allocation0]]
  $region73: #{tpu_custom_call.1} parent=0
    _
  %s10 = ssub.s32 1, %s8
  %s11 = scalar_select 0, %s10, %s8
  loop: start=0, step=1, limit=4
  $region2: #{tpu_custom_call.1} parent=0 // loop_pre_header
    _
  $region3: #{tpu_custom_call.1} parent=0 // loop_header
    %s13 = sphi 0, %s17
    %p14 = scmp.ge.s32.totalorder %s13, 4
    %s20 = sphi 0, %s39
    %s21 = sphi 0, %s35
    %s22 = sphi 0, %s31
    %s23 = sphi 0, %s20
    %s24 = sphi 0, %s21
    %s25 = sphi 0, %s22
    %s26 = sphi 0, %s23
    %s27 = sphi 0, %s24
    %s28 = sphi 0, %s25
    %s46 = sphi 0, %s48
    %s49 = sphi 0, %s46
    %s50 = sphi 0, %s49
    %s66 = sphi 0, %s50
    %s72 = sphi 0, %s74
    %s75 = sphi 0, %s72
    %s76 = sphi 0, %s75
    %s92 = sphi 0, %s76
    %s98 = sphi 0, %s100
    %s101 = sphi 0, %s98
    %s102 = sphi 0, %s101
    %s118 = sphi 0, %s102
    %s124 = sphi 0, %s126
    %s127 = sphi 0, %s124
    %s128 = sphi 0, %s127
    %s144 = sphi 0, %s128
    %s152 = sphi 0, %s154
    %s155 = sphi 0, %s152
    %s156 = sphi 0, %s155
    %s172 = sphi 0, %s156
    %s180 = sphi 0, %s182
    %s183 = sphi 0, %s180
    %s184 = sphi 0, %s183
    %s200 = sphi 0, %s184
    %s208 = sphi 0, %s210
    %s211 = sphi 0, %s208
    %s212 = sphi 0, %s211
    %s228 = sphi 0, %s212
  $region4: #{tpu_custom_call.1} parent=0 // loop_header_branch
    %16 = sbr.rel (%p14) target = $region8
  $region5: #{tpu_custom_call.1} parent=0 // loop_body
    %s18 = ssub.s32 %s13, 1
    %s19 = ssub.s32 %s13, 2
    %s29 = sadd.s32 1, %s22
    %p30 = scmp.ge.s32.totalorder %s29, 1
    %s31 = scalar_select %p30, 0, %s29
    %s32 = sadd.s32 1, %s21
    %s33 = scalar_select %p30, %s32, %s21
    %p34 = scmp.ge.s32.totalorder %s33, 1
    %s35 = scalar_select %p34, 0, %s33
    %s36 = sadd.s32 1, %s20
    %s37 = scalar_select %p34, %s36, %s20
    %p38 = scmp.ge.s32.totalorder %s37, 2
    %s39 = scalar_select %p38, 0, %s37
    %s40 = ssub.s32 %s20, %s39
    %s41 = ssub.s32 %s21, %s35
    %s42 = sor.u32 %s40, %s41
    %s43 = ssub.s32 %s22, %s31
    %s44 = sor.u32 %s42, %s43
    %p45 = scmp.eq.s32.totalorder %s44, 0
    %s47 = sadd.s32 %s46, 1
    %s48 = scalar_select %p45, %s46, %s47
    %p51 = pneg %p45
    %p52 = scmp.eq.s32.totalorder %s13, 1
    %p53 = por %p51, %p52
    %p54 = scmp.ne.s32.totalorder %s46, %s49
    %p55 = scmp.eq.s32.totalorder %s13, 0
    %p56 = por %p54, %p55
    %p57 = scmp.ne.s32.totalorder %s46, %s49
    %p58 = scmp.eq.s32.totalorder %s18, 1
    %p59 = por %p57, %p58
    %p60 = scmp.ne.s32.totalorder %s49, %s50
    %p61 = scmp.eq.s32.totalorder %s18, 0
    %p62 = por %p60, %p61
    %p63 = scmp.ne.s32.totalorder %s49, %s50
    %p64 = scmp.eq.s32.totalorder %s19, 1
    %p65 = por %p63, %p64
    %p67 = scmp.ne.s32.totalorder %s50, %s66
    %p68 = scmp.eq.s32.totalorder %s19, 0
    %p69 = por %p67, %p68
    %s70 = ssub.s32 %s22, %s31
    %p71 = scmp.eq.s32.totalorder %s70, 0
    %s73 = sadd.s32 %s72, 1
    %s74 = scalar_select %p71, %s72, %s73
    %p77 = pneg %p71
    %p78 = scmp.eq.s32.totalorder %s13, 1
    %p79 = por %p77, %p78
    %p80 = scmp.ne.s32.totalorder %s72, %s75
    %p81 = scmp.eq.s32.totalorder %s13, 0
    %p82 = por %p80, %p81
    %p83 = scmp.ne.s32.totalorder %s72, %s75
    %p84 = scmp.eq.s32.totalorder %s18, 1
    %p85 = por %p83, %p84
    %p86 = scmp.ne.s32.totalorder %s75, %s76
    %p87 = scmp.eq.s32.totalorder %s18, 0
    %p88 = por %p86, %p87
    %p89 = scmp.ne.s32.totalorder %s75, %s76
    %p90 = scmp.eq.s32.totalorder %s19, 1
    %p91 = por %p89, %p90
    %p93 = scmp.ne.s32.totalorder %s76, %s92
    %p94 = scmp.eq.s32.totalorder %s19, 0
    %p95 = por %p93, %p94
    %s96 = ssub.s32 %s22, %s31
    %p97 = scmp.eq.s32.totalorder %s96, 0
    %s99 = sadd.s32 %s98, 1
    %s100 = scalar_select %p97, %s98, %s99
    %p103 = pneg %p97
    %p104 = scmp.eq.s32.totalorder %s13, 1
    %p105 = por %p103, %p104
    %p106 = scmp.ne.s32.totalorder %s98, %s101
    %p107 = scmp.eq.s32.totalorder %s13, 0
    %p108 = por %p106, %p107
    %p109 = scmp.ne.s32.totalorder %s98, %s101
    %p110 = scmp.eq.s32.totalorder %s18, 1
    %p111 = por %p109, %p110
    %p112 = scmp.ne.s32.totalorder %s101, %s102
    %p113 = scmp.eq.s32.totalorder %s18, 0
    %p114 = por %p112, %p113
    %p115 = scmp.ne.s32.totalorder %s101, %s102
    %p116 = scmp.eq.s32.totalorder %s19, 1
    %p117 = por %p115, %p116
    %p119 = scmp.ne.s32.totalorder %s102, %s118
    %p120 = scmp.eq.s32.totalorder %s19, 0
    %p121 = por %p119, %p120
    %s122 = ssub.s32 %s22, %s31
    %p123 = scmp.eq.s32.totalorder %s122, 0
    %s125 = sadd.s32 %s124, 1
    %s126 = scalar_select %p123, %s124, %s125
    %p129 = pneg %p123
    %p130 = scmp.eq.s32.totalorder %s13, 1
    %p131 = por %p129, %p130
    %p132 = scmp.ne.s32.totalorder %s124, %s127
    %p133 = scmp.eq.s32.totalorder %s13, 0
    %p134 = por %p132, %p133
    %p135 = scmp.ne.s32.totalorder %s124, %s127
    %p136 = scmp.eq.s32.totalorder %s18, 1
    %p137 = por %p135, %p136
    %p138 = scmp.ne.s32.totalorder %s127, %s128
    %p139 = scmp.eq.s32.totalorder %s18, 0
    %p140 = por %p138, %p139
    %p141 = scmp.ne.s32.totalorder %s127, %s128
    %p142 = scmp.eq.s32.totalorder %s19, 1
    %p143 = por %p141, %p142
    %p145 = scmp.ne.s32.totalorder %s128, %s144
    %p146 = scmp.eq.s32.totalorder %s19, 0
    %p147 = por %p145, %p146
    %s148 = ssub.s32 %s20, %s39
    %s149 = ssub.s32 %s21, %s35
    %s150 = sor.u32 %s148, %s149
    %p151 = scmp.eq.s32.totalorder %s150, 0
    %s153 = sadd.s32 %s152, 1
    %s154 = scalar_select %p151, %s152, %s153
    %p157 = pneg %p151
    %p158 = scmp.eq.s32.totalorder %s13, 1
    %p159 = por %p157, %p158
    %p160 = scmp.ne.s32.totalorder %s152, %s155
    %p161 = scmp.eq.s32.totalorder %s13, 0
    %p162 = por %p160, %p161
    %p163 = scmp.ne.s32.totalorder %s152, %s155
    %p164 = scmp.eq.s32.totalorder %s18, 1
    %p165 = por %p163, %p164
    %p166 = scmp.ne.s32.totalorder %s155, %s156
    %p167 = scmp.eq.s32.totalorder %s18, 0
    %p168 = por %p166, %p167
    %p169 = scmp.ne.s32.totalorder %s155, %s156
    %p170 = scmp.eq.s32.totalorder %s19, 1
    %p171 = por %p169, %p170
    %p173 = scmp.ne.s32.totalorder %s156, %s172
    %p174 = scmp.eq.s32.totalorder %s19, 0
    %p175 = por %p173, %p174
    %s176 = ssub.s32 %s20, %s39
    %s177 = ssub.s32 %s21, %s35
    %s178 = sor.u32 %s176, %s177
    %p179 = scmp.eq.s32.totalorder %s178, 0
    %s181 = sadd.s32 %s180, 1
    %s182 = scalar_select %p179, %s180, %s181
    %p185 = pneg %p179
    %p186 = scmp.eq.s32.totalorder %s13, 1
    %p187 = por %p185, %p186
    %p188 = scmp.ne.s32.totalorder %s180, %s183
    %p189 = scmp.eq.s32.totalorder %s13, 0
    %p190 = por %p188, %p189
    %p191 = scmp.ne.s32.totalorder %s180, %s183
    %p192 = scmp.eq.s32.totalorder %s18, 1
    %p193 = por %p191, %p192
    %p194 = scmp.ne.s32.totalorder %s183, %s184
    %p195 = scmp.eq.s32.totalorder %s18, 0
    %p196 = por %p194, %p195
    %p197 = scmp.ne.s32.totalorder %s183, %s184
    %p198 = scmp.eq.s32.totalorder %s19, 1
    %p199 = por %p197, %p198
    %p201 = scmp.ne.s32.totalorder %s184, %s200
    %p202 = scmp.eq.s32.totalorder %s19, 0
    %p203 = por %p201, %p202
    %s204 = ssub.s32 %s20, %s39
    %s205 = ssub.s32 %s21, %s35
    %s206 = sor.u32 %s204, %s205
    %p207 = scmp.eq.s32.totalorder %s206, 0
    %s209 = sadd.s32 %s208, 1
    %s210 = scalar_select %p207, %s208, %s209
    %p213 = pneg %p207
    %p214 = scmp.eq.s32.totalorder %s13, 1
    %p215 = por %p213, %p214
    %p216 = scmp.ne.s32.totalorder %s208, %s211
    %p217 = scmp.eq.s32.totalorder %s13, 0
    %p218 = por %p216, %p217
    %p219 = scmp.ne.s32.totalorder %s208, %s211
    %p220 = scmp.eq.s32.totalorder %s18, 1
    %p221 = por %p219, %p220
    %p222 = scmp.ne.s32.totalorder %s211, %s212
    %p223 = scmp.eq.s32.totalorder %s18, 0
    %p224 = por %p222, %p223
    %p225 = scmp.ne.s32.totalorder %s211, %s212
    %p226 = scmp.eq.s32.totalorder %s19, 1
    %p227 = por %p225, %p226
    %p229 = scmp.ne.s32.totalorder %s212, %s228
    %p230 = scmp.eq.s32.totalorder %s19, 0
    %p231 = por %p229, %p230
    %p232 = scmp.le.s32.totalorder 1, %s13
    %p233 = scmp.lt.s32.totalorder %s13, 3
    %p234 = pnand %p232, %p233
    %p235 = pneg %p234
    // Predicated region
    $region9: #{tpu_custom_call.1} parent=5 // pred_check
      _
    $region10: #{tpu_custom_call.1} parent=5 // pred_check_branch
      %237 = sbr.rel (%p234) target = $region12
    $region11: #{tpu_custom_call.1} parent=5 // pred_region
      %s238 = ssub.s32 %s13, 1
      // Predicated region
      $region13: #{tpu_custom_call.1} parent=11 // pred_check
        %p239 = pneg %p88
      $region14: #{tpu_custom_call.1} parent=11 // pred_check_branch
        %241 = sbr.rel (%p239) target = $region16
      $region15: #{tpu_custom_call.1} parent=11 // pred_region
        %s242 = smul.u32 4, %s25
        %p243 = scmp.lt.s32.totalorder %s242, 3
        %s244 = scalar_select %p243, %s242, 3
        %s245 = smul.addr %s244, 8
        %s246 = scalar_lea.vmem %s1, %s245
        %s247 = smul.u32 4, %s25
      $region16: #{tpu_custom_call.1} parent=11 // pred_fallthru
        _
      // Predicated region
      $region17: #{tpu_custom_call.1} parent=11 // pred_check
        %p248 = pneg %p114
      $region18: #{tpu_custom_call.1} parent=11 // pred_check_branch
        %250 = sbr.rel (%p248) target = $region20
      $region19: #{tpu_custom_call.1} parent=11 // pred_region
        %s251 = smul.u32 4, %s25
        %p252 = scmp.lt.s32.totalorder %s251, 3
        %s253 = scalar_select %p252, %s251, 3
        %s254 = smul.addr %s253, 8
        %s255 = scalar_lea.vmem %s2, %s254
        %s256 = smul.u32 4, %s25
      $region20: #{tpu_custom_call.1} parent=11 // pred_fallthru
        _
      // Predicated region
      $region21: #{tpu_custom_call.1} parent=11 // pred_check
        %p257 = pneg %p140
      $region22: #{tpu_custom_call.1} parent=11 // pred_check_branch
        %259 = sbr.rel (%p257) target = $region24
      $region23: #{tpu_custom_call.1} parent=11 // pred_region
        %s260 = smul.u32 4, %s25
        %p261 = scmp.lt.s32.totalorder %s260, 3
        %s262 = scalar_select %p261, %s260, 3
        %s263 = smul.addr %s262, 8
        %s264 = scalar_lea.vmem %s3, %s263
        %s265 = smul.u32 4, %s25
      $region24: #{tpu_custom_call.1} parent=11 // pred_fallthru
        _
    $region12: #{tpu_custom_call.1} parent=5 // pred_fallthru
      _
    %p266 = scmp.lt.s32.totalorder %s13, 2
    // Predicated region
    $region25: #{tpu_custom_call.1} parent=5 // pred_check
      %p267 = pneg %p266
    $region26: #{tpu_custom_call.1} parent=5 // pred_check_branch
      %269 = sbr.rel (%p267) target = $region28
    $region27: #{tpu_custom_call.1} parent=5 // pred_region
      // Predicated region
      $region29: #{tpu_custom_call.1} parent=27 // pred_check
        %p270 = pneg %p56
      $region30: #{tpu_custom_call.1} parent=27 // pred_check_branch
        %272 = sbr.rel (%p270) target = $region32
      $region31: #{tpu_custom_call.1} parent=27 // pred_region
        %p273 = scmp.lt.s32.totalorder %s20, 1
        %s274 = scalar_select %p273, %s20, 1
        %p275 = scmp.lt.s32.totalorder %s21, 0
        %s276 = scalar_select %p275, %s21, 0
        %p277 = scmp.lt.s32.totalorder %s22, 0
        %s278 = scalar_select %p277, %s22, 0
        %s279 = sadd.s32 %s278, %s276
        %s280 = sadd.s32 %s279, %s274
        %s281 = smul.addr %s280, 8
        %s282 = scalar_lea.vmem %s0, %s281
      $region32: #{tpu_custom_call.1} parent=27 // pred_fallthru
        _
    $region28: #{tpu_custom_call.1} parent=5 // pred_fallthru
      _
    %p283 = scmp.le.s32.totalorder 1, %s13
    %p284 = scmp.lt.s32.totalorder %s13, 3
    %p285 = pnand %p283, %p284
    %p286 = pneg %p285
    // Predicated region
    $region33: #{tpu_custom_call.1} parent=5 // pred_check
      _
    $region34: #{tpu_custom_call.1} parent=5 // pred_check_branch
      %288 = sbr.rel (%p285) target = $region36
    $region35: #{tpu_custom_call.1} parent=5 // pred_region
      %s289 = ssub.s32 %s13, 1
      %p290 = scmp.lt.s32.totalorder %s23, 1
      %s291 = scalar_select %p290, %s23, 1
      %p292 = scmp.lt.s32.totalorder %s24, 0
      %s293 = scalar_select %p292, %s24, 0
      %p294 = scmp.lt.s32.totalorder %s25, 0
      %s295 = scalar_select %p294, %s25, 0
      %s296 = sadd.s32 %s295, %s293
      %s297 = sadd.s32 %s296, %s291
      %s298 = smul.addr %s297, 8
      %s299 = scalar_lea.vmem %s0, %s298
      %p300 = pneg %p62
      %p301 = pneg %p59
      %s302 = smul.u32 4, %s25
      %p303 = scmp.lt.s32.totalorder %s302, 3
      %s304 = scalar_select %p303, %s302, 3
      %s305 = smul.addr %s304, 8
      %s306 = scalar_lea.vmem %s1, %s305
      %p307 = pneg %p88
      %p308 = pneg %p85
      %s309 = smul.u32 4, %s25
      %p310 = scmp.lt.s32.totalorder %s309, 3
      %s311 = scalar_select %p310, %s309, 3
      %s312 = smul.addr %s311, 8
      %s313 = scalar_lea.vmem %s2, %s312
      %p314 = pneg %p114
      %p315 = pneg %p111
      %s316 = smul.u32 4, %s25
      %p317 = scmp.lt.s32.totalorder %s316, 3
      %s318 = scalar_select %p317, %s316, 3
      %s319 = smul.addr %s318, 8
      %s320 = scalar_lea.vmem %s3, %s319
      %p321 = pneg %p140
      %p322 = pneg %p137
      %p323 = pneg %p168
      %p324 = pneg %p165
      %p325 = scmp.lt.s32.totalorder %s23, 1
      %s326 = scalar_select %p325, %s23, 1
      %p327 = scmp.lt.s32.totalorder %s24, 0
      %s328 = scalar_select %p327, %s24, 0
      %s329 = smul.addr %s326, 8
      %s330 = sadd.s32 %s328, %s329
      %s331 = smul.addr %s330, 8
      %s332 = scalar_lea.vmem %s4, %s331
      %p333 = pneg %p196
      %p334 = pneg %p193
      %p335 = scmp.lt.s32.totalorder %s23, 1
      %s336 = scalar_select %p335, %s23, 1
      %p337 = scmp.lt.s32.totalorder %s24, 0
      %s338 = scalar_select %p337, %s24, 0
      %s339 = smul.addr %s336, 8
      %s340 = sadd.s32 %s338, %s339
      %s341 = smul.addr %s340, 8
      %s342 = scalar_lea.vmem %s5, %s341
      %p343 = pneg %p224
      %p344 = pneg %p221
      %p345 = scmp.lt.s32.totalorder %s23, 1
      %s346 = scalar_select %p345, %s23, 1
      %p347 = scmp.lt.s32.totalorder %s24, 0
      %s348 = scalar_select %p347, %s24, 0
      %s349 = smul.addr %s346, 8
      %s350 = sadd.s32 %s348, %s349
      %s351 = smul.addr %s350, 8
      %s352 = scalar_lea.vmem %s6, %s351
      %p353 = scmp.lt.s32.totalorder %s23, 1
      %s354 = scalar_select %p353, %s23, 1
      %p355 = scmp.lt.s32.totalorder %s24, 0
      %s356 = scalar_select %p355, %s24, 0
      %p357 = scmp.lt.s32.totalorder %s25, 0
      %s358 = scalar_select %p357, %s25, 0
      %s359 = sadd.s32 %s358, %s356
      %s360 = sadd.s32 %s359, %s354
      %s361 = smul.addr %s360, 8
      %s362 = scalar_lea.vmem %s0, %s361
      %s363 = smul.u32 4, %s25
      %p364 = scmp.lt.s32.totalorder %s363, 3
      %s365 = scalar_select %p364, %s363, 3
      %s366 = smul.addr %s365, 8
      %s367 = scalar_lea.vmem %s1, %s366
      %s368 = smul.u32 4, %s25
      %s369 = smul.u32 4, %s25
      %p370 = scmp.lt.s32.totalorder %s369, 3
      %s371 = scalar_select %p370, %s369, 3
      %s372 = smul.addr %s371, 8
      %s373 = scalar_lea.vmem %s2, %s372
      %s374 = smul.u32 4, %s25
      %s375 = smul.u32 4, %s25
      %p376 = scmp.lt.s32.totalorder %s375, 3
      %s377 = scalar_select %p376, %s375, 3
      %s378 = smul.addr %s377, 8
      %s379 = scalar_lea.vmem %s3, %s378
      %s380 = smul.u32 4, %s25
      %p381 = scmp.lt.s32.totalorder %s23, 1
      %s382 = scalar_select %p381, %s23, 1
      %p383 = scmp.lt.s32.totalorder %s24, 0
      %s384 = scalar_select %p383, %s24, 0
      %s385 = smul.addr %s382, 8
      %s386 = sadd.s32 %s384, %s385
      %s387 = smul.addr %s386, 8
      %s388 = scalar_lea.vmem %s4, %s387
      %p389 = scmp.lt.s32.totalorder %s23, 1
      %s390 = scalar_select %p389, %s23, 1
      %p391 = scmp.lt.s32.totalorder %s24, 0
      %s392 = scalar_select %p391, %s24, 0
      %s393 = smul.addr %s390, 8
      %s394 = sadd.s32 %s392, %s393
      %s395 = smul.addr %s394, 8
      %s396 = scalar_lea.vmem %s5, %s395
      %p397 = scmp.lt.s32.totalorder %s23, 1
      %s398 = scalar_select %p397, %s23, 1
      %p399 = scmp.lt.s32.totalorder %s24, 0
      %s400 = scalar_select %p399, %s24, 0
      %s401 = smul.addr %s398, 8
      %s402 = sadd.s32 %s400, %s401
      %s403 = smul.addr %s402, 8
      %s404 = scalar_lea.vmem %s6, %s403
      %p405 = scmp.eq.s32.totalorder %s25, 0
      // Predicated region
      $region37: #{tpu_custom_call.1} parent=35 // pred_check
        %p406 = pneg %p405
      $region38: #{tpu_custom_call.1} parent=35 // pred_check_branch
        %408 = sbr.rel (%p406) target = $region40
      $region39: #{tpu_custom_call.1} parent=35 // pred_region
        %vm409 = vcmask 31744
        %410 = vst.msk [vmem:[#allocation2] sm:$0xff] %vm409, 0.0
        %411 = vst.msk [vmem:[#allocation2 + $0x8] sm:$0xff] %vm409, 0.0
        %412 = vst.msk [vmem:[#allocation2 + $0x10] sm:$0xff] %vm409, 0.0
        %413 = vst.msk [vmem:[#allocation2 + $0x18] sm:$0xff] %vm409, 0.0
        %414 = vst.msk [vmem:[#allocation2 + $0x20] sm:$0xff] %vm409, 0.0
        %415 = vst.msk [vmem:[#allocation2 + $0x28] sm:$0xff] %vm409, 0.0
        %416 = vst.msk [vmem:[#allocation2 + $0x30] sm:$0xff] %vm409, 0.0
        %417 = vst.msk [vmem:[#allocation2 + $0x38] sm:$0xff] %vm409, 0.0
        %418 = vst.msk [vmem:[#allocation3] sm:$0xff] %vm409, 0.0
        %419 = vst.msk [vmem:[#allocation3 + $0x8] sm:$0xff] %vm409, 0.0
        %420 = vst.msk [vmem:[#allocation3 + $0x10] sm:$0xff] %vm409, 0.0
        %421 = vst.msk [vmem:[#allocation3 + $0x18] sm:$0xff] %vm409, 0.0
        %422 = vst.msk [vmem:[#allocation3 + $0x20] sm:$0xff] %vm409, 0.0
        %423 = vst.msk [vmem:[#allocation3 + $0x28] sm:$0xff] %vm409, 0.0
        %424 = vst.msk [vmem:[#allocation3 + $0x30] sm:$0xff] %vm409, 0.0
        %425 = vst.msk [vmem:[#allocation3 + $0x38] sm:$0xff] %vm409, 0.0
        %426 = vst.msk [vmem:[#allocation4] sm:$0xff] %vm409, 0.0
        %427 = vst.msk [vmem:[#allocation4 + $0x8] sm:$0xff] %vm409, 0.0
        %428 = vst.msk [vmem:[#allocation4 + $0x10] sm:$0xff] %vm409, 0.0
        %429 = vst.msk [vmem:[#allocation4 + $0x18] sm:$0xff] %vm409, 0.0
        %430 = vst.msk [vmem:[#allocation4 + $0x20] sm:$0xff] %vm409, 0.0
        %431 = vst.msk [vmem:[#allocation4 + $0x28] sm:$0xff] %vm409, 0.0
        %432 = vst.msk [vmem:[#allocation4 + $0x30] sm:$0xff] %vm409, 0.0
        %433 = vst.msk [vmem:[#allocation4 + $0x38] sm:$0xff] %vm409, 0.0
      $region40: #{tpu_custom_call.1} parent=35 // pred_fallthru
        _
      %v434 = vld [vmem:[%s362] sm:$0xff]
      %v435 = vld [vmem:[#allocation2] sm:$0xff]
      %v436 = vld [vmem:[%s367] sm:$0xff]
      %v437 = vld [vmem:[%s367 + $0x8] sm:$0xff]
      %v438 = vld [vmem:[%s367 + $0x10] sm:$0xff]
      %v439 = vld [vmem:[%s367 + $0x18] sm:$0xff]
      %vm440 = vcmask 261120
      %v442 = vsel %vm440, %v434, 0
      %444 = vmatpush.msra.mxu0 0.0
      %445 = vmatpush.msra.mxu0 0.0
      %446 = vmatpush.msra.mxu0 0.0
      %447 = vmatpush.msra.mxu0 0.0
      %448 = vmatpush.msra.mxu0 0.0
      %449 = vmatpush.msra.mxu0 0.0
      %450 = vmatpush.msra.mxu0 0.0
      %451 = vmatpush.msra.mxu0 0.0
      %452 = vmatpush.msra.mxu0 0.0
      %453 = vmatpush.msra.mxu0 0.0
      %454 = vmatpush.msra.mxu0 0.0
      %455 = vmatpush.msra.mxu0 0.0
      %456 = vmatpush.msra.mxu0 %v439
      %457 = vmatpush.msra.mxu0 %v438
      %458 = vmatpush.msra.mxu0 %v437
      %459 = vmatpush.msra.mxu0 %v436
      %460 = vmatmul.f32.gmra.mxu0 %v442
      %v461 = vpop.f32.mrf.mxu0
      %v462 = vadd.f32 0.0, %v461
      %463 = vdwg.mxu0
      %v464 = vadd.f32 %v435, %v462
      %vm465 = vcmask 31744
      %466 = vst.msk [vmem:[#allocation2] sm:$0xff] %vm465, %v464
      %v467 = vld [vmem:[#allocation3] sm:$0xff]
      %v468 = vld [vmem:[%s373] sm:$0xff]
      %v469 = vld [vmem:[%s373 + $0x8] sm:$0xff]
      %v470 = vld [vmem:[%s373 + $0x10] sm:$0xff]
      %v471 = vld [vmem:[%s373 + $0x18] sm:$0xff]
      %472 = vmatpush.msra.mxu0 0.0
      %473 = vmatpush.msra.mxu0 0.0
      %474 = vmatpush.msra.mxu0 0.0
      %475 = vmatpush.msra.mxu0 0.0
      %476 = vmatpush.msra.mxu0 0.0
      %477 = vmatpush.msra.mxu0 0.0
      %478 = vmatpush.msra.mxu0 0.0
      %479 = vmatpush.msra.mxu0 0.0
      %480 = vmatpush.msra.mxu0 0.0
      %481 = vmatpush.msra.mxu0 0.0
      %482 = vmatpush.msra.mxu0 0.0
      %483 = vmatpush.msra.mxu0 0.0
      %484 = vmatpush.msra.mxu0 %v471
      %485 = vmatpush.msra.mxu0 %v470
      %486 = vmatpush.msra.mxu0 %v469
      %487 = vmatpush.msra.mxu0 %v468
      %488 = vmatmul.f32.gmra.mxu0 %v442
      %v489 = vpop.f32.mrf.mxu0
      %v490 = vadd.f32 0.0, %v489
      %491 = vdwg.mxu0
      %v492 = vadd.f32 %v467, %v490
      %493 = vst.msk [vmem:[#allocation3] sm:$0xff] %vm465, %v492
      %v494 = vld [vmem:[#allocation4] sm:$0xff]
      %v495 = vld [vmem:[%s379] sm:$0xff]
      %v496 = vld [vmem:[%s379 + $0x8] sm:$0xff]
      %v497 = vld [vmem:[%s379 + $0x10] sm:$0xff]
      %v498 = vld [vmem:[%s379 + $0x18] sm:$0xff]
      %499 = vmatpush.msra.mxu0 0.0
      %500 = vmatpush.msra.mxu0 0.0
      %501 = vmatpush.msra.mxu0 0.0
      %502 = vmatpush.msra.mxu0 0.0
      %503 = vmatpush.msra.mxu0 0.0
      %504 = vmatpush.msra.mxu0 0.0
      %505 = vmatpush.msra.mxu0 0.0
      %506 = vmatpush.msra.mxu0 0.0
      %507 = vmatpush.msra.mxu0 0.0
      %508 = vmatpush.msra.mxu0 0.0
      %509 = vmatpush.msra.mxu0 0.0
      %510 = vmatpush.msra.mxu0 0.0
      %511 = vmatpush.msra.mxu0 %v498
      %512 = vmatpush.msra.mxu0 %v497
      %513 = vmatpush.msra.mxu0 %v496
      %514 = vmatpush.msra.mxu0 %v495
      %515 = vmatmul.f32.gmra.mxu0 %v442
      %v516 = vpop.f32.mrf.mxu0
      %v517 = vadd.f32 0.0, %v516
      %518 = vdwg.mxu0
      %v519 = vadd.f32 %v494, %v517
      %520 = vst.msk [vmem:[#allocation4] sm:$0xff] %vm465, %v519
      %s521 = scalar_lea.vmem [#allocation2], 8
      %v522 = vld [vmem:[%s521] sm:$0xff]
      %s523 = scalar_lea.vmem %s367, 32
      %v524 = vld [vmem:[%s523] sm:$0xff]
      %v525 = vld [vmem:[%s523 + $0x8] sm:$0xff]
      %v526 = vld [vmem:[%s523 + $0x10] sm:$0xff]
      %v527 = vld [vmem:[%s523 + $0x18] sm:$0xff]
      %528 = vmatpush.msra.mxu0 0.0
      %529 = vmatpush.msra.mxu0 0.0
      %530 = vmatpush.msra.mxu0 0.0
      %531 = vmatpush.msra.mxu0 0.0
      %532 = vmatpush.msra.mxu0 0.0
      %533 = vmatpush.msra.mxu0 0.0
      %534 = vmatpush.msra.mxu0 0.0
      %535 = vmatpush.msra.mxu0 0.0
      %536 = vmatpush.msra.mxu0 0.0
      %537 = vmatpush.msra.mxu0 0.0
      %538 = vmatpush.msra.mxu0 0.0
      %539 = vmatpush.msra.mxu0 0.0
      %540 = vmatpush.msra.mxu0 %v527
      %541 = vmatpush.msra.mxu0 %v526
      %542 = vmatpush.msra.mxu0 %v525
      %543 = vmatpush.msra.mxu0 %v524
      %544 = vmatmul.f32.gmra.mxu0 %v442
      %v545 = vpop.f32.mrf.mxu0
      %v546 = vadd.f32 0.0, %v545
      %547 = vdwg.mxu0
      %v548 = vadd.f32 %v522, %v546
      %549 = vst.msk [vmem:[%s521] sm:$0xff] %vm465, %v548
      %s550 = scalar_lea.vmem [#allocation3], 8
      %v551 = vld [vmem:[%s550] sm:$0xff]
      %s552 = scalar_lea.vmem %s373, 32
      %v553 = vld [vmem:[%s552] sm:$0xff]
      %v554 = vld [vmem:[%s552 + $0x8] sm:$0xff]
      %v555 = vld [vmem:[%s552 + $0x10] sm:$0xff]
      %v556 = vld [vmem:[%s552 + $0x18] sm:$0xff]
      %557 = vmatpush.msra.mxu0 0.0
      %558 = vmatpush.msra.mxu0 0.0
      %559 = vmatpush.msra.mxu0 0.0
      %560 = vmatpush.msra.mxu0 0.0
      %561 = vmatpush.msra.mxu0 0.0
      %562 = vmatpush.msra.mxu0 0.0
      %563 = vmatpush.msra.mxu0 0.0
      %564 = vmatpush.msra.mxu0 0.0
      %565 = vmatpush.msra.mxu0 0.0
      %566 = vmatpush.msra.mxu0 0.0
      %567 = vmatpush.msra.mxu0 0.0
      %568 = vmatpush.msra.mxu0 0.0
      %569 = vmatpush.msra.mxu0 %v556
      %570 = vmatpush.msra.mxu0 %v555
      %571 = vmatpush.msra.mxu0 %v554
      %572 = vmatpush.msra.mxu0 %v553
      %573 = vmatmul.f32.gmra.mxu0 %v442
      %v574 = vpop.f32.mrf.mxu0
      %v575 = vadd.f32 0.0, %v574
      %576 = vdwg.mxu0
      %v577 = vadd.f32 %v551, %v575
      %578 = vst.msk [vmem:[%s550] sm:$0xff] %vm465, %v577
      %s579 = scalar_lea.vmem [#allocation4], 8
      %v580 = vld [vmem:[%s579] sm:$0xff]
      %s581 = scalar_lea.vmem %s379, 32
      %v582 = vld [vmem:[%s581] sm:$0xff]
      %v583 = vld [vmem:[%s581 + $0x8] sm:$0xff]
      %v584 = vld [vmem:[%s581 + $0x10] sm:$0xff]
      %v585 = vld [vmem:[%s581 + $0x18] sm:$0xff]
      %586 = vmatpush.msra.mxu0 0.0
      %587 = vmatpush.msra.mxu0 0.0
      %588 = vmatpush.msra.mxu0 0.0
      %589 = vmatpush.msra.mxu0 0.0
      %590 = vmatpush.msra.mxu0 0.0
      %591 = vmatpush.msra.mxu0 0.0
      %592 = vmatpush.msra.mxu0 0.0
      %593 = vmatpush.msra.mxu0 0.0
      %594 = vmatpush.msra.mxu0 0.0
      %595 = vmatpush.msra.mxu0 0.0
      %596 = vmatpush.msra.mxu0 0.0
      %597 = vmatpush.msra.mxu0 0.0
      %598 = vmatpush.msra.mxu0 %v585
      %599 = vmatpush.msra.mxu0 %v584
      %600 = vmatpush.msra.mxu0 %v583
      %601 = vmatpush.msra.mxu0 %v582
      %602 = vmatmul.f32.gmra.mxu0 %v442
      %v603 = vpop.f32.mrf.mxu0
      %v604 = vadd.f32 0.0, %v603
      %605 = vdwg.mxu0
      %v606 = vadd.f32 %v580, %v604
      %607 = vst.msk [vmem:[%s579] sm:$0xff] %vm465, %v606
      %s608 = scalar_lea.vmem [#allocation2], 16
      %v609 = vld [vmem:[%s608] sm:$0xff]
      %s610 = scalar_lea.vmem %s367, 64
      %v611 = vld [vmem:[%s610] sm:$0xff]
      %v612 = vld [vmem:[%s610 + $0x8] sm:$0xff]
      %v613 = vld [vmem:[%s610 + $0x10] sm:$0xff]
      %v614 = vld [vmem:[%s610 + $0x18] sm:$0xff]
      %615 = vmatpush.msra.mxu0 0.0
      %616 = vmatpush.msra.mxu0 0.0
      %617 = vmatpush.msra.mxu0 0.0
      %618 = vmatpush.msra.mxu0 0.0
      %619 = vmatpush.msra.mxu0 0.0
      %620 = vmatpush.msra.mxu0 0.0
      %621 = vmatpush.msra.mxu0 0.0
      %622 = vmatpush.msra.mxu0 0.0
      %623 = vmatpush.msra.mxu0 0.0
      %624 = vmatpush.msra.mxu0 0.0
      %625 = vmatpush.msra.mxu0 0.0
      %626 = vmatpush.msra.mxu0 0.0
      %627 = vmatpush.msra.mxu0 %v614
      %628 = vmatpush.msra.mxu0 %v613
      %629 = vmatpush.msra.mxu0 %v612
      %630 = vmatpush.msra.mxu0 %v611
      %631 = vmatmul.f32.gmra.mxu0 %v442
      %v632 = vpop.f32.mrf.mxu0
      %v633 = vadd.f32 0.0, %v632
      %634 = vdwg.mxu0
      %v635 = vadd.f32 %v609, %v633
      %636 = vst.msk [vmem:[%s608] sm:$0xff] %vm465, %v635
      %s637 = scalar_lea.vmem [#allocation3], 16
      %v638 = vld [vmem:[%s637] sm:$0xff]
      %s639 = scalar_lea.vmem %s373, 64
      %v640 = vld [vmem:[%s639] sm:$0xff]
      %v641 = vld [vmem:[%s639 + $0x8] sm:$0xff]
      %v642 = vld [vmem:[%s639 + $0x10] sm:$0xff]
      %v643 = vld [vmem:[%s639 + $0x18] sm:$0xff]
      %644 = vmatpush.msra.mxu0 0.0
      %645 = vmatpush.msra.mxu0 0.0
      %646 = vmatpush.msra.mxu0 0.0
      %647 = vmatpush.msra.mxu0 0.0
      %648 = vmatpush.msra.mxu0 0.0
      %649 = vmatpush.msra.mxu0 0.0
      %650 = vmatpush.msra.mxu0 0.0
      %651 = vmatpush.msra.mxu0 0.0
      %652 = vmatpush.msra.mxu0 0.0
      %653 = vmatpush.msra.mxu0 0.0
      %654 = vmatpush.msra.mxu0 0.0
      %655 = vmatpush.msra.mxu0 0.0
      %656 = vmatpush.msra.mxu0 %v643
      %657 = vmatpush.msra.mxu0 %v642
      %658 = vmatpush.msra.mxu0 %v641
      %659 = vmatpush.msra.mxu0 %v640
      %660 = vmatmul.f32.gmra.mxu0 %v442
      %v661 = vpop.f32.mrf.mxu0
      %v662 = vadd.f32 0.0, %v661
      %663 = vdwg.mxu0
      %v664 = vadd.f32 %v638, %v662
      %665 = vst.msk [vmem:[%s637] sm:$0xff] %vm465, %v664
      %s666 = scalar_lea.vmem [#allocation4], 16
      %v667 = vld [vmem:[%s666] sm:$0xff]
      %s668 = scalar_lea.vmem %s379, 64
      %v669 = vld [vmem:[%s668] sm:$0xff]
      %v670 = vld [vmem:[%s668 + $0x8] sm:$0xff]
      %v671 = vld [vmem:[%s668 + $0x10] sm:$0xff]
      %v672 = vld [vmem:[%s668 + $0x18] sm:$0xff]
      %673 = vmatpush.msra.mxu0 0.0
      %674 = vmatpush.msra.mxu0 0.0
      %675 = vmatpush.msra.mxu0 0.0
      %676 = vmatpush.msra.mxu0 0.0
      %677 = vmatpush.msra.mxu0 0.0
      %678 = vmatpush.msra.mxu0 0.0
      %679 = vmatpush.msra.mxu0 0.0
      %680 = vmatpush.msra.mxu0 0.0
      %681 = vmatpush.msra.mxu0 0.0
      %682 = vmatpush.msra.mxu0 0.0
      %683 = vmatpush.msra.mxu0 0.0
      %684 = vmatpush.msra.mxu0 0.0
      %685 = vmatpush.msra.mxu0 %v672
      %686 = vmatpush.msra.mxu0 %v671
      %687 = vmatpush.msra.mxu0 %v670
      %688 = vmatpush.msra.mxu0 %v669
      %689 = vmatmul.f32.gmra.mxu0 %v442
      %v690 = vpop.f32.mrf.mxu0
      %v691 = vadd.f32 0.0, %v690
      %692 = vdwg.mxu0
      %v693 = vadd.f32 %v667, %v691
      %694 = vst.msk [vmem:[%s666] sm:$0xff] %vm465, %v693
      %s695 = scalar_lea.vmem [#allocation2], 24
      %v696 = vld [vmem:[%s695] sm:$0xff]
      %s697 = scalar_lea.vmem %s367, 96
      %v698 = vld [vmem:[%s697] sm:$0xff]
      %v699 = vld [vmem:[%s697 + $0x8] sm:$0xff]
      %v700 = vld [vmem:[%s697 + $0x10] sm:$0xff]
      %v701 = vld [vmem:[%s697 + $0x18] sm:$0xff]
      %702 = vmatpush.msra.mxu0 0.0
      %703 = vmatpush.msra.mxu0 0.0
      %704 = vmatpush.msra.mxu0 0.0
      %705 = vmatpush.msra.mxu0 0.0
      %706 = vmatpush.msra.mxu0 0.0
      %707 = vmatpush.msra.mxu0 0.0
      %708 = vmatpush.msra.mxu0 0.0
      %709 = vmatpush.msra.mxu0 0.0
      %710 = vmatpush.msra.mxu0 0.0
      %711 = vmatpush.msra.mxu0 0.0
      %712 = vmatpush.msra.mxu0 0.0
      %713 = vmatpush.msra.mxu0 0.0
      %714 = vmatpush.msra.mxu0 %v701
      %715 = vmatpush.msra.mxu0 %v700
      %716 = vmatpush.msra.mxu0 %v699
      %717 = vmatpush.msra.mxu0 %v698
      %718 = vmatmul.f32.gmra.mxu0 %v442
      %v719 = vpop.f32.mrf.mxu0
      %v720 = vadd.f32 0.0, %v719
      %721 = vdwg.mxu0
      %v722 = vadd.f32 %v696, %v720
      %723 = vst.msk [vmem:[%s695] sm:$0xff] %vm465, %v722
      %s724 = scalar_lea.vmem [#allocation3], 24
      %v725 = vld [vmem:[%s724] sm:$0xff]
      %s726 = scalar_lea.vmem %s373, 96
      %v727 = vld [vmem:[%s726] sm:$0xff]
      %v728 = vld [vmem:[%s726 + $0x8] sm:$0xff]
      %v729 = vld [vmem:[%s726 + $0x10] sm:$0xff]
      %v730 = vld [vmem:[%s726 + $0x18] sm:$0xff]
      %731 = vmatpush.msra.mxu0 0.0
      %732 = vmatpush.msra.mxu0 0.0
      %733 = vmatpush.msra.mxu0 0.0
      %734 = vmatpush.msra.mxu0 0.0
      %735 = vmatpush.msra.mxu0 0.0
      %736 = vmatpush.msra.mxu0 0.0
      %737 = vmatpush.msra.mxu0 0.0
      %738 = vmatpush.msra.mxu0 0.0
      %739 = vmatpush.msra.mxu0 0.0
      %740 = vmatpush.msra.mxu0 0.0
      %741 = vmatpush.msra.mxu0 0.0
      %742 = vmatpush.msra.mxu0 0.0
      %743 = vmatpush.msra.mxu0 %v730
      %744 = vmatpush.msra.mxu0 %v729
      %745 = vmatpush.msra.mxu0 %v728
      %746 = vmatpush.msra.mxu0 %v727
      %747 = vmatmul.f32.gmra.mxu0 %v442
      %v748 = vpop.f32.mrf.mxu0
      %v749 = vadd.f32 0.0, %v748
      %750 = vdwg.mxu0
      %v751 = vadd.f32 %v725, %v749
      %752 = vst.msk [vmem:[%s724] sm:$0xff] %vm465, %v751
      %s753 = scalar_lea.vmem [#allocation4], 24
      %v754 = vld [vmem:[%s753] sm:$0xff]
      %s755 = scalar_lea.vmem %s379, 96
      %v756 = vld [vmem:[%s755] sm:$0xff]
      %v757 = vld [vmem:[%s755 + $0x8] sm:$0xff]
      %v758 = vld [vmem:[%s755 + $0x10] sm:$0xff]
      %v759 = vld [vmem:[%s755 + $0x18] sm:$0xff]
      %760 = vmatpush.msra.mxu0 0.0
      %761 = vmatpush.msra.mxu0 0.0
      %762 = vmatpush.msra.mxu0 0.0
      %763 = vmatpush.msra.mxu0 0.0
      %764 = vmatpush.msra.mxu0 0.0
      %765 = vmatpush.msra.mxu0 0.0
      %766 = vmatpush.msra.mxu0 0.0
      %767 = vmatpush.msra.mxu0 0.0
      %768 = vmatpush.msra.mxu0 0.0
      %769 = vmatpush.msra.mxu0 0.0
      %770 = vmatpush.msra.mxu0 0.0
      %771 = vmatpush.msra.mxu0 0.0
      %772 = vmatpush.msra.mxu0 %v759
      %773 = vmatpush.msra.mxu0 %v758
      %774 = vmatpush.msra.mxu0 %v757
      %775 = vmatpush.msra.mxu0 %v756
      %776 = vmatmul.f32.gmra.mxu0 %v442
      %v777 = vpop.f32.mrf.mxu0
      %v778 = vadd.f32 0.0, %v777
      %779 = vdwg.mxu0
      %v780 = vadd.f32 %v754, %v778
      %781 = vst.msk [vmem:[%s753] sm:$0xff] %vm465, %v780
      %s782 = scalar_lea.vmem [#allocation2], 32
      %v783 = vld [vmem:[%s782] sm:$0xff]
      %s784 = scalar_lea.vmem %s367, 128
      %v785 = vld [vmem:[%s784] sm:$0xff]
      %v786 = vld [vmem:[%s784 + $0x8] sm:$0xff]
      %v787 = vld [vmem:[%s784 + $0x10] sm:$0xff]
      %v788 = vld [vmem:[%s784 + $0x18] sm:$0xff]
      %789 = vmatpush.msra.mxu0 0.0
      %790 = vmatpush.msra.mxu0 0.0
      %791 = vmatpush.msra.mxu0 0.0
      %792 = vmatpush.msra.mxu0 0.0
      %793 = vmatpush.msra.mxu0 0.0
      %794 = vmatpush.msra.mxu0 0.0
      %795 = vmatpush.msra.mxu0 0.0
      %796 = vmatpush.msra.mxu0 0.0
      %797 = vmatpush.msra.mxu0 0.0
      %798 = vmatpush.msra.mxu0 0.0
      %799 = vmatpush.msra.mxu0 0.0
      %800 = vmatpush.msra.mxu0 0.0
      %801 = vmatpush.msra.mxu0 %v788
      %802 = vmatpush.msra.mxu0 %v787
      %803 = vmatpush.msra.mxu0 %v786
      %804 = vmatpush.msra.mxu0 %v785
      %805 = vmatmul.f32.gmra.mxu0 %v442
      %v806 = vpop.f32.mrf.mxu0
      %v807 = vadd.f32 0.0, %v806
      %808 = vdwg.mxu0
      %v809 = vadd.f32 %v783, %v807
      %810 = vst.msk [vmem:[%s782] sm:$0xff] %vm465, %v809
      %s811 = scalar_lea.vmem [#allocation3], 32
      %v812 = vld [vmem:[%s811] sm:$0xff]
      %s813 = scalar_lea.vmem %s373, 128
      %v814 = vld [vmem:[%s813] sm:$0xff]
      %v815 = vld [vmem:[%s813 + $0x8] sm:$0xff]
      %v816 = vld [vmem:[%s813 + $0x10] sm:$0xff]
      %v817 = vld [vmem:[%s813 + $0x18] sm:$0xff]
      %818 = vmatpush.msra.mxu0 0.0
      %819 = vmatpush.msra.mxu0 0.0
      %820 = vmatpush.msra.mxu0 0.0
      %821 = vmatpush.msra.mxu0 0.0
      %822 = vmatpush.msra.mxu0 0.0
      %823 = vmatpush.msra.mxu0 0.0
      %824 = vmatpush.msra.mxu0 0.0
      %825 = vmatpush.msra.mxu0 0.0
      %826 = vmatpush.msra.mxu0 0.0
      %827 = vmatpush.msra.mxu0 0.0
      %828 = vmatpush.msra.mxu0 0.0
      %829 = vmatpush.msra.mxu0 0.0
      %830 = vmatpush.msra.mxu0 %v817
      %831 = vmatpush.msra.mxu0 %v816
      %832 = vmatpush.msra.mxu0 %v815
      %833 = vmatpush.msra.mxu0 %v814
      %834 = vmatmul.f32.gmra.mxu0 %v442
      %v835 = vpop.f32.mrf.mxu0
      %v836 = vadd.f32 0.0, %v835
      %837 = vdwg.mxu0
      %v838 = vadd.f32 %v812, %v836
      %839 = vst.msk [vmem:[%s811] sm:$0xff] %vm465, %v838
      %s840 = scalar_lea.vmem [#allocation4], 32
      %v841 = vld [vmem:[%s840] sm:$0xff]
      %s842 = scalar_lea.vmem %s379, 128
      %v843 = vld [vmem:[%s842] sm:$0xff]
      %v844 = vld [vmem:[%s842 + $0x8] sm:$0xff]
      %v845 = vld [vmem:[%s842 + $0x10] sm:$0xff]
      %v846 = vld [vmem:[%s842 + $0x18] sm:$0xff]
      %847 = vmatpush.msra.mxu0 0.0
      %848 = vmatpush.msra.mxu0 0.0
      %849 = vmatpush.msra.mxu0 0.0
      %850 = vmatpush.msra.mxu0 0.0
      %851 = vmatpush.msra.mxu0 0.0
      %852 = vmatpush.msra.mxu0 0.0
      %853 = vmatpush.msra.mxu0 0.0
      %854 = vmatpush.msra.mxu0 0.0
      %855 = vmatpush.msra.mxu0 0.0
      %856 = vmatpush.msra.mxu0 0.0
      %857 = vmatpush.msra.mxu0 0.0
      %858 = vmatpush.msra.mxu0 0.0
      %859 = vmatpush.msra.mxu0 %v846
      %860 = vmatpush.msra.mxu0 %v845
      %861 = vmatpush.msra.mxu0 %v844
      %862 = vmatpush.msra.mxu0 %v843
      %863 = vmatmul.f32.gmra.mxu0 %v442
      %v864 = vpop.f32.mrf.mxu0
      %v865 = vadd.f32 0.0, %v864
      %866 = vdwg.mxu0
      %v867 = vadd.f32 %v841, %v865
      %868 = vst.msk [vmem:[%s840] sm:$0xff] %vm465, %v867
      %s869 = scalar_lea.vmem [#allocation2], 40
      %v870 = vld [vmem:[%s869] sm:$0xff]
      %s871 = scalar_lea.vmem %s367, 160
      %v872 = vld [vmem:[%s871] sm:$0xff]
      %v873 = vld [vmem:[%s871 + $0x8] sm:$0xff]
      %v874 = vld [vmem:[%s871 + $0x10] sm:$0xff]
      %v875 = vld [vmem:[%s871 + $0x18] sm:$0xff]
      %876 = vmatpush.msra.mxu0 0.0
      %877 = vmatpush.msra.mxu0 0.0
      %878 = vmatpush.msra.mxu0 0.0
      %879 = vmatpush.msra.mxu0 0.0
      %880 = vmatpush.msra.mxu0 0.0
      %881 = vmatpush.msra.mxu0 0.0
      %882 = vmatpush.msra.mxu0 0.0
      %883 = vmatpush.msra.mxu0 0.0
      %884 = vmatpush.msra.mxu0 0.0
      %885 = vmatpush.msra.mxu0 0.0
      %886 = vmatpush.msra.mxu0 0.0
      %887 = vmatpush.msra.mxu0 0.0
      %888 = vmatpush.msra.mxu0 %v875
      %889 = vmatpush.msra.mxu0 %v874
      %890 = vmatpush.msra.mxu0 %v873
      %891 = vmatpush.msra.mxu0 %v872
      %892 = vmatmul.f32.gmra.mxu0 %v442
      %v893 = vpop.f32.mrf.mxu0
      %v894 = vadd.f32 0.0, %v893
      %895 = vdwg.mxu0
      %v896 = vadd.f32 %v870, %v894
      %897 = vst.msk [vmem:[%s869] sm:$0xff] %vm465, %v896
      %s898 = scalar_lea.vmem [#allocation3], 40
      %v899 = vld [vmem:[%s898] sm:$0xff]
      %s900 = scalar_lea.vmem %s373, 160
      %v901 = vld [vmem:[%s900] sm:$0xff]
      %v902 = vld [vmem:[%s900 + $0x8] sm:$0xff]
      %v903 = vld [vmem:[%s900 + $0x10] sm:$0xff]
      %v904 = vld [vmem:[%s900 + $0x18] sm:$0xff]
      %905 = vmatpush.msra.mxu0 0.0
      %906 = vmatpush.msra.mxu0 0.0
      %907 = vmatpush.msra.mxu0 0.0
      %908 = vmatpush.msra.mxu0 0.0
      %909 = vmatpush.msra.mxu0 0.0
      %910 = vmatpush.msra.mxu0 0.0
      %911 = vmatpush.msra.mxu0 0.0
      %912 = vmatpush.msra.mxu0 0.0
      %913 = vmatpush.msra.mxu0 0.0
      %914 = vmatpush.msra.mxu0 0.0
      %915 = vmatpush.msra.mxu0 0.0
      %916 = vmatpush.msra.mxu0 0.0
      %917 = vmatpush.msra.mxu0 %v904
      %918 = vmatpush.msra.mxu0 %v903
      %919 = vmatpush.msra.mxu0 %v902
      %920 = vmatpush.msra.mxu0 %v901
      %921 = vmatmul.f32.gmra.mxu0 %v442
      %v922 = vpop.f32.mrf.mxu0
      %v923 = vadd.f32 0.0, %v922
      %924 = vdwg.mxu0
      %v925 = vadd.f32 %v899, %v923
      %926 = vst.msk [vmem:[%s898] sm:$0xff] %vm465, %v925
      %s927 = scalar_lea.vmem [#allocation4], 40
      %v928 = vld [vmem:[%s927] sm:$0xff]
      %s929 = scalar_lea.vmem %s379, 160
      %v930 = vld [vmem:[%s929] sm:$0xff]
      %v931 = vld [vmem:[%s929 + $0x8] sm:$0xff]
      %v932 = vld [vmem:[%s929 + $0x10] sm:$0xff]
      %v933 = vld [vmem:[%s929 + $0x18] sm:$0xff]
      %934 = vmatpush.msra.mxu0 0.0
      %935 = vmatpush.msra.mxu0 0.0
      %936 = vmatpush.msra.mxu0 0.0
      %937 = vmatpush.msra.mxu0 0.0
      %938 = vmatpush.msra.mxu0 0.0
      %939 = vmatpush.msra.mxu0 0.0
      %940 = vmatpush.msra.mxu0 0.0
      %941 = vmatpush.msra.mxu0 0.0
      %942 = vmatpush.msra.mxu0 0.0
      %943 = vmatpush.msra.mxu0 0.0
      %944 = vmatpush.msra.mxu0 0.0
      %945 = vmatpush.msra.mxu0 0.0
      %946 = vmatpush.msra.mxu0 %v933
      %947 = vmatpush.msra.mxu0 %v932
      %948 = vmatpush.msra.mxu0 %v931
      %949 = vmatpush.msra.mxu0 %v930
      %950 = vmatmul.f32.gmra.mxu0 %v442
      %v951 = vpop.f32.mrf.mxu0
      %v952 = vadd.f32 0.0, %v951
      %953 = vdwg.mxu0
      %v954 = vadd.f32 %v928, %v952
      %955 = vst.msk [vmem:[%s927] sm:$0xff] %vm465, %v954
      %s956 = scalar_lea.vmem [#allocation2], 48
      %v957 = vld [vmem:[%s956] sm:$0xff]
      %s958 = scalar_lea.vmem %s367, 192
      %v959 = vld [vmem:[%s958] sm:$0xff]
      %v960 = vld [vmem:[%s958 + $0x8] sm:$0xff]
      %v961 = vld [vmem:[%s958 + $0x10] sm:$0xff]
      %v962 = vld [vmem:[%s958 + $0x18] sm:$0xff]
      %963 = vmatpush.msra.mxu0 0.0
      %964 = vmatpush.msra.mxu0 0.0
      %965 = vmatpush.msra.mxu0 0.0
      %966 = vmatpush.msra.mxu0 0.0
      %967 = vmatpush.msra.mxu0 0.0
      %968 = vmatpush.msra.mxu0 0.0
      %969 = vmatpush.msra.mxu0 0.0
      %970 = vmatpush.msra.mxu0 0.0
      %971 = vmatpush.msra.mxu0 0.0
      %972 = vmatpush.msra.mxu0 0.0
      %973 = vmatpush.msra.mxu0 0.0
      %974 = vmatpush.msra.mxu0 0.0
      %975 = vmatpush.msra.mxu0 %v962
      %976 = vmatpush.msra.mxu0 %v961
      %977 = vmatpush.msra.mxu0 %v960
      %978 = vmatpush.msra.mxu0 %v959
      %979 = vmatmul.f32.gmra.mxu0 %v442
      %v980 = vpop.f32.mrf.mxu0
      %v981 = vadd.f32 0.0, %v980
      %982 = vdwg.mxu0
      %v983 = vadd.f32 %v957, %v981
      %984 = vst.msk [vmem:[%s956] sm:$0xff] %vm465, %v983
      %s985 = scalar_lea.vmem [#allocation3], 48
      %v986 = vld [vmem:[%s985] sm:$0xff]
      %s987 = scalar_lea.vmem %s373, 192
      %v988 = vld [vmem:[%s987] sm:$0xff]
      %v989 = vld [vmem:[%s987 + $0x8] sm:$0xff]
      %v990 = vld [vmem:[%s987 + $0x10] sm:$0xff]
      %v991 = vld [vmem:[%s987 + $0x18] sm:$0xff]
      %992 = vmatpush.msra.mxu0 0.0
      %993 = vmatpush.msra.mxu0 0.0
      %994 = vmatpush.msra.mxu0 0.0
      %995 = vmatpush.msra.mxu0 0.0
      %996 = vmatpush.msra.mxu0 0.0
      %997 = vmatpush.msra.mxu0 0.0
      %998 = vmatpush.msra.mxu0 0.0
      %999 = vmatpush.msra.mxu0 0.0
      %1000 = vmatpush.msra.mxu0 0.0
      %1001 = vmatpush.msra.mxu0 0.0
      %1002 = vmatpush.msra.mxu0 0.0
      %1003 = vmatpush.msra.mxu0 0.0
      %1004 = vmatpush.msra.mxu0 %v991
      %1005 = vmatpush.msra.mxu0 %v990
      %1006 = vmatpush.msra.mxu0 %v989
      %1007 = vmatpush.msra.mxu0 %v988
      %1008 = vmatmul.f32.gmra.mxu0 %v442
      %v1009 = vpop.f32.mrf.mxu0
      %v1010 = vadd.f32 0.0, %v1009
      %1011 = vdwg.mxu0
      %v1012 = vadd.f32 %v986, %v1010
      %1013 = vst.msk [vmem:[%s985] sm:$0xff] %vm465, %v1012
      %s1014 = scalar_lea.vmem [#allocation4], 48
      %v1015 = vld [vmem:[%s1014] sm:$0xff]
      %s1016 = scalar_lea.vmem %s379, 192
      %v1017 = vld [vmem:[%s1016] sm:$0xff]
      %v1018 = vld [vmem:[%s1016 + $0x8] sm:$0xff]
      %v1019 = vld [vmem:[%s1016 + $0x10] sm:$0xff]
      %v1020 = vld [vmem:[%s1016 + $0x18] sm:$0xff]
      %1021 = vmatpush.msra.mxu0 0.0
      %1022 = vmatpush.msra.mxu0 0.0
      %1023 = vmatpush.msra.mxu0 0.0
      %1024 = vmatpush.msra.mxu0 0.0
      %1025 = vmatpush.msra.mxu0 0.0
      %1026 = vmatpush.msra.mxu0 0.0
      %1027 = vmatpush.msra.mxu0 0.0
      %1028 = vmatpush.msra.mxu0 0.0
      %1029 = vmatpush.msra.mxu0 0.0
      %1030 = vmatpush.msra.mxu0 0.0
      %1031 = vmatpush.msra.mxu0 0.0
      %1032 = vmatpush.msra.mxu0 0.0
      %1033 = vmatpush.msra.mxu0 %v1020
      %1034 = vmatpush.msra.mxu0 %v1019
      %1035 = vmatpush.msra.mxu0 %v1018
      %1036 = vmatpush.msra.mxu0 %v1017
      %1037 = vmatmul.f32.gmra.mxu0 %v442
      %v1038 = vpop.f32.mrf.mxu0
      %v1039 = vadd.f32 0.0, %v1038
      %1040 = vdwg.mxu0
      %v1041 = vadd.f32 %v1015, %v1039
      %1042 = vst.msk [vmem:[%s1014] sm:$0xff] %vm465, %v1041
      %s1043 = scalar_lea.vmem [#allocation2], 56
      %v1044 = vld [vmem:[%s1043] sm:$0xff]
      %s1045 = scalar_lea.vmem %s367, 224
      %v1046 = vld [vmem:[%s1045] sm:$0xff]
      %v1047 = vld [vmem:[%s1045 + $0x8] sm:$0xff]
      %v1048 = vld [vmem:[%s1045 + $0x10] sm:$0xff]
      %v1049 = vld [vmem:[%s1045 + $0x18] sm:$0xff]
      %1050 = vmatpush.msra.mxu0 0.0
      %1051 = vmatpush.msra.mxu0 0.0
      %1052 = vmatpush.msra.mxu0 0.0
      %1053 = vmatpush.msra.mxu0 0.0
      %1054 = vmatpush.msra.mxu0 0.0
      %1055 = vmatpush.msra.mxu0 0.0
      %1056 = vmatpush.msra.mxu0 0.0
      %1057 = vmatpush.msra.mxu0 0.0
      %1058 = vmatpush.msra.mxu0 0.0
      %1059 = vmatpush.msra.mxu0 0.0
      %1060 = vmatpush.msra.mxu0 0.0
      %1061 = vmatpush.msra.mxu0 0.0
      %1062 = vmatpush.msra.mxu0 %v1049
      %1063 = vmatpush.msra.mxu0 %v1048
      %1064 = vmatpush.msra.mxu0 %v1047
      %1065 = vmatpush.msra.mxu0 %v1046
      %1066 = vmatmul.f32.gmra.mxu0 %v442
      %v1067 = vpop.f32.mrf.mxu0
      %v1068 = vadd.f32 0.0, %v1067
      %1069 = vdwg.mxu0
      %v1070 = vadd.f32 %v1044, %v1068
      %1071 = vst.msk [vmem:[%s1043] sm:$0xff] %vm465, %v1070
      %s1072 = scalar_lea.vmem [#allocation3], 56
      %v1073 = vld [vmem:[%s1072] sm:$0xff]
      %s1074 = scalar_lea.vmem %s373, 224
      %v1075 = vld [vmem:[%s1074] sm:$0xff]
      %v1076 = vld [vmem:[%s1074 + $0x8] sm:$0xff]
      %v1077 = vld [vmem:[%s1074 + $0x10] sm:$0xff]
      %v1078 = vld [vmem:[%s1074 + $0x18] sm:$0xff]
      %1079 = vmatpush.msra.mxu0 0.0
      %1080 = vmatpush.msra.mxu0 0.0
      %1081 = vmatpush.msra.mxu0 0.0
      %1082 = vmatpush.msra.mxu0 0.0
      %1083 = vmatpush.msra.mxu0 0.0
      %1084 = vmatpush.msra.mxu0 0.0
      %1085 = vmatpush.msra.mxu0 0.0
      %1086 = vmatpush.msra.mxu0 0.0
      %1087 = vmatpush.msra.mxu0 0.0
      %1088 = vmatpush.msra.mxu0 0.0
      %1089 = vmatpush.msra.mxu0 0.0
      %1090 = vmatpush.msra.mxu0 0.0
      %1091 = vmatpush.msra.mxu0 %v1078
      %1092 = vmatpush.msra.mxu0 %v1077
      %1093 = vmatpush.msra.mxu0 %v1076
      %1094 = vmatpush.msra.mxu0 %v1075
      %1095 = vmatmul.f32.gmra.mxu0 %v442
      %v1096 = vpop.f32.mrf.mxu0
      %v1097 = vadd.f32 0.0, %v1096
      %1098 = vdwg.mxu0
      %v1099 = vadd.f32 %v1073, %v1097
      %1100 = vst.msk [vmem:[%s1072] sm:$0xff] %vm465, %v1099
      %s1101 = scalar_lea.vmem [#allocation4], 56
      %v1102 = vld [vmem:[%s1101] sm:$0xff]
      %s1103 = scalar_lea.vmem %s379, 224
      %v1104 = vld [vmem:[%s1103] sm:$0xff]
      %v1105 = vld [vmem:[%s1103 + $0x8] sm:$0xff]
      %v1106 = vld [vmem:[%s1103 + $0x10] sm:$0xff]
      %v1107 = vld [vmem:[%s1103 + $0x18] sm:$0xff]
      %1108 = vmatpush.msra.mxu0 0.0
      %1109 = vmatpush.msra.mxu0 0.0
      %1110 = vmatpush.msra.mxu0 0.0
      %1111 = vmatpush.msra.mxu0 0.0
      %1112 = vmatpush.msra.mxu0 0.0
      %1113 = vmatpush.msra.mxu0 0.0
      %1114 = vmatpush.msra.mxu0 0.0
      %1115 = vmatpush.msra.mxu0 0.0
      %1116 = vmatpush.msra.mxu0 0.0
      %1117 = vmatpush.msra.mxu0 0.0
      %1118 = vmatpush.msra.mxu0 0.0
      %1119 = vmatpush.msra.mxu0 0.0
      %1120 = vmatpush.msra.mxu0 %v1107
      %1121 = vmatpush.msra.mxu0 %v1106
      %1122 = vmatpush.msra.mxu0 %v1105
      %1123 = vmatpush.msra.mxu0 %v1104
      %1124 = vmatmul.f32.gmra.mxu0 %v442
      %v1125 = vpop.f32.mrf.mxu0
      %v1126 = vadd.f32 0.0, %v1125
      %1127 = vdwg.mxu0
      %v1128 = vadd.f32 %v1102, %v1126
      %1129 = vst.msk [vmem:[%s1101] sm:$0xff] %vm465, %v1128
      // Predicated region
      $region41: #{tpu_custom_call.1} parent=35 // pred_check
        %p1130 = pneg %p405
      $region42: #{tpu_custom_call.1} parent=35 // pred_check_branch
        %1132 = sbr.rel (%p1130) target = $region44
      $region43: #{tpu_custom_call.1} parent=35 // pred_region
        %v1133 = vld [vmem:[#allocation2] sm:$0xff]
        %v1134 = vld [vmem:[#allocation2 + $0x8] sm:$0xff]
        %v1135 = vld [vmem:[#allocation2 + $0x10] sm:$0xff]
        %v1136 = vld [vmem:[#allocation2 + $0x18] sm:$0xff]
        %v1137 = vld [vmem:[#allocation2 + $0x20] sm:$0xff]
        %v1138 = vld [vmem:[#allocation2 + $0x28] sm:$0xff]
        %v1139 = vld [vmem:[#allocation2 + $0x30] sm:$0xff]
        %v1140 = vld [vmem:[#allocation2 + $0x38] sm:$0xff]
        %1141 = vst.msk [vmem:[%s388] sm:$0xff] %vm465, %v1133
        %1142 = vst.msk [vmem:[%s388 + $0x8] sm:$0xff] %vm465, %v1134
        %1143 = vst.msk [vmem:[%s388 + $0x10] sm:$0xff] %vm465, %v1135
        %1144 = vst.msk [vmem:[%s388 + $0x18] sm:$0xff] %vm465, %v1136
        %1145 = vst.msk [vmem:[%s388 + $0x20] sm:$0xff] %vm465, %v1137
        %1146 = vst.msk [vmem:[%s388 + $0x28] sm:$0xff] %vm465, %v1138
        %1147 = vst.msk [vmem:[%s388 + $0x30] sm:$0xff] %vm465, %v1139
        %1148 = vst.msk [vmem:[%s388 + $0x38] sm:$0xff] %vm465, %v1140
        %v1149 = vld [vmem:[#allocation3] sm:$0xff]
        %v1150 = vld [vmem:[#allocation3 + $0x8] sm:$0xff]
        %v1151 = vld [vmem:[#allocation3 + $0x10] sm:$0xff]
        %v1152 = vld [vmem:[#allocation3 + $0x18] sm:$0xff]
        %v1153 = vld [vmem:[#allocation3 + $0x20] sm:$0xff]
        %v1154 = vld [vmem:[#allocation3 + $0x28] sm:$0xff]
        %v1155 = vld [vmem:[#allocation3 + $0x30] sm:$0xff]
        %v1156 = vld [vmem:[#allocation3 + $0x38] sm:$0xff]
        %1157 = vst.msk [vmem:[%s396] sm:$0xff] %vm465, %v1149
        %1158 = vst.msk [vmem:[%s396 + $0x8] sm:$0xff] %vm465, %v1150
        %1159 = vst.msk [vmem:[%s396 + $0x10] sm:$0xff] %vm465, %v1151
        %1160 = vst.msk [vmem:[%s396 + $0x18] sm:$0xff] %vm465, %v1152
        %1161 = vst.msk [vmem:[%s396 + $0x20] sm:$0xff] %vm465, %v1153
        %1162 = vst.msk [vmem:[%s396 + $0x28] sm:$0xff] %vm465, %v1154
        %1163 = vst.msk [vmem:[%s396 + $0x30] sm:$0xff] %vm465, %v1155
        %1164 = vst.msk [vmem:[%s396 + $0x38] sm:$0xff] %vm465, %v1156
        %v1165 = vld [vmem:[#allocation4] sm:$0xff]
        %v1166 = vld [vmem:[#allocation4 + $0x8] sm:$0xff]
        %v1167 = vld [vmem:[#allocation4 + $0x10] sm:$0xff]
        %v1168 = vld [vmem:[#allocation4 + $0x18] sm:$0xff]
        %v1169 = vld [vmem:[#allocation4 + $0x20] sm:$0xff]
        %v1170 = vld [vmem:[#allocation4 + $0x28] sm:$0xff]
        %v1171 = vld [vmem:[#allocation4 + $0x30] sm:$0xff]
        %v1172 = vld [vmem:[#allocation4 + $0x38] sm:$0xff]
        %1173 = vst.msk [vmem:[%s404] sm:$0xff] %vm465, %v1165
        %1174 = vst.msk [vmem:[%s404 + $0x8] sm:$0xff] %vm465, %v1166
        %1175 = vst.msk [vmem:[%s404 + $0x10] sm:$0xff] %vm465, %v1167
        %1176 = vst.msk [vmem:[%s404 + $0x18] sm:$0xff] %vm465, %v1168
        %1177 = vst.msk [vmem:[%s404 + $0x20] sm:$0xff] %vm465, %v1169
        %1178 = vst.msk [vmem:[%s404 + $0x28] sm:$0xff] %vm465, %v1170
        %1179 = vst.msk [vmem:[%s404 + $0x30] sm:$0xff] %vm465, %v1171
        %1180 = vst.msk [vmem:[%s404 + $0x38] sm:$0xff] %vm465, %v1172
      $region44: #{tpu_custom_call.1} parent=35 // pred_fallthru
        _
      %p1181 = scmp.lt.s32.totalorder %s23, 1
      %s1182 = scalar_select %p1181, %s23, 1
      %p1183 = scmp.lt.s32.totalorder %s24, 0
      %s1184 = scalar_select %p1183, %s24, 0
      %s1185 = smul.addr %s1182, 8
      %s1186 = sadd.s32 %s1184, %s1185
      %s1187 = smul.addr %s1186, 8
      %s1188 = scalar_lea.vmem %s4, %s1187
      %p1189 = scmp.lt.s32.totalorder %s23, 1
      %s1190 = scalar_select %p1189, %s23, 1
      %p1191 = scmp.lt.s32.totalorder %s24, 0
      %s1192 = scalar_select %p1191, %s24, 0
      %s1193 = smul.addr %s1190, 8
      %s1194 = sadd.s32 %s1192, %s1193
      %s1195 = smul.addr %s1194, 8
      %s1196 = scalar_lea.vmem %s5, %s1195
      %p1197 = scmp.lt.s32.totalorder %s23, 1
      %s1198 = scalar_select %p1197, %s23, 1
      %p1199 = scmp.lt.s32.totalorder %s24, 0
      %s1200 = scalar_select %p1199, %s24, 0
      %s1201 = smul.addr %s1198, 8
      %s1202 = sadd.s32 %s1200, %s1201
      %s1203 = smul.addr %s1202, 8
      %s1204 = scalar_lea.vmem %s6, %s1203
      // Predicated region
      $region45: #{tpu_custom_call.1} parent=35 // pred_check
        %p1205 = pneg %p165
      $region46: #{tpu_custom_call.1} parent=35 // pred_check_branch
        %1207 = sbr.rel (%p1205) target = $region48
      $region47: #{tpu_custom_call.1} parent=35 // pred_region
        _
      $region48: #{tpu_custom_call.1} parent=35 // pred_fallthru
        _
      // Predicated region
      $region49: #{tpu_custom_call.1} parent=35 // pred_check
        %p1208 = pneg %p193
      $region50: #{tpu_custom_call.1} parent=35 // pred_check_branch
        %1210 = sbr.rel (%p1208) target = $region52
      $region51: #{tpu_custom_call.1} parent=35 // pred_region
        _
      $region52: #{tpu_custom_call.1} parent=35 // pred_fallthru
        _
      // Predicated region
      $region53: #{tpu_custom_call.1} parent=35 // pred_check
        %p1211 = pneg %p221
      $region54: #{tpu_custom_call.1} parent=35 // pred_check_branch
        %1213 = sbr.rel (%p1211) target = $region56
      $region55: #{tpu_custom_call.1} parent=35 // pred_region
        _
      $region56: #{tpu_custom_call.1} parent=35 // pred_fallthru
        _
    $region36: #{tpu_custom_call.1} parent=5 // pred_fallthru
      _
    %p1214 = scmp.le.s32.totalorder 2, %s13
    // Predicated region
    $region57: #{tpu_custom_call.1} parent=5 // pred_check
      %p1215 = pneg %p1214
    $region58: #{tpu_custom_call.1} parent=5 // pred_check_branch
      %1217 = sbr.rel (%p1215) target = $region60
    $region59: #{tpu_custom_call.1} parent=5 // pred_region
      %s1218 = ssub.s32 %s13, 2
      // Predicated region
      $region61: #{tpu_custom_call.1} parent=59 // pred_check
        %p1219 = pneg %p171
      $region62: #{tpu_custom_call.1} parent=59 // pred_check_branch
        %1221 = sbr.rel (%p1219) target = $region64
      $region63: #{tpu_custom_call.1} parent=59 // pred_region
        %p1222 = scmp.lt.s32.totalorder %s26, 1
        %s1223 = scalar_select %p1222, %s26, 1
        %p1224 = scmp.lt.s32.totalorder %s27, 0
        %s1225 = scalar_select %p1224, %s27, 0
        %s1226 = smul.addr %s1223, 8
        %s1227 = sadd.s32 %s1225, %s1226
        %s1228 = smul.addr %s1227, 8
        %s1229 = scalar_lea.vmem %s4, %s1228
      $region64: #{tpu_custom_call.1} parent=59 // pred_fallthru
        _
      // Predicated region
      $region65: #{tpu_custom_call.1} parent=59 // pred_check
        %p1230 = pneg %p199
      $region66: #{tpu_custom_call.1} parent=59 // pred_check_branch
        %1232 = sbr.rel (%p1230) target = $region68
      $region67: #{tpu_custom_call.1} parent=59 // pred_region
        %p1233 = scmp.lt.s32.totalorder %s26, 1
        %s1234 = scalar_select %p1233, %s26, 1
        %p1235 = scmp.lt.s32.totalorder %s27, 0
        %s1236 = scalar_select %p1235, %s27, 0
        %s1237 = smul.addr %s1234, 8
        %s1238 = sadd.s32 %s1236, %s1237
        %s1239 = smul.addr %s1238, 8
        %s1240 = scalar_lea.vmem %s5, %s1239
      $region68: #{tpu_custom_call.1} parent=59 // pred_fallthru
        _
      // Predicated region
      $region69: #{tpu_custom_call.1} parent=59 // pred_check
        %p1241 = pneg %p227
      $region70: #{tpu_custom_call.1} parent=59 // pred_check_branch
        %1243 = sbr.rel (%p1241) target = $region72
      $region71: #{tpu_custom_call.1} parent=59 // pred_region
        %p1244 = scmp.lt.s32.totalorder %s26, 1
        %s1245 = scalar_select %p1244, %s26, 1
        %p1246 = scmp.lt.s32.totalorder %s27, 0
        %s1247 = scalar_select %p1246, %s27, 0
        %s1248 = smul.addr %s1245, 8
        %s1249 = sadd.s32 %s1247, %s1248
        %s1250 = smul.addr %s1249, 8
        %s1251 = scalar_lea.vmem %s6, %s1250
      $region72: #{tpu_custom_call.1} parent=59 // pred_fallthru
        _
    $region60: #{tpu_custom_call.1} parent=5 // pred_fallthru
      _
  $region6: #{tpu_custom_call.1} parent=0 // loop_footer
    %s17 = sadd.s32 1, %s13
  $region7: #{tpu_custom_call.1} parent=0 // loop_footer_branch
    %12 = sbr.rel target = $region3
  $region8: #{tpu_custom_call.1} parent=0 // loop_exit
    _

</llo_original>
